<compile_context>
chip_gen: v6e
topology: v6e:2x2x1
jax: 0.10.0
libtpu: 0.0.40
codegen_flags: <defaults>
</compile_context>

<pallas_src>
import functools

import numpy as np
import jax
import jax.numpy as jnp
from jax.experimental import pallas as pl
from jax.experimental.pallas import tpu as pltpu


_VMEM_LIMIT = 32 * 1024 * 1024  # safe on v5e/v6e (128 MiB) and v7x (64 MiB)


def _compiler_params(n_grid_dims):
    return pltpu.CompilerParams(
        dimension_semantics=("parallel",) * n_grid_dims,
        vmem_limit_bytes=_VMEM_LIMIT,
    )


def _round_up(x, m):
    return ((x + m - 1) // m) * m


def _pick_row_tile(n, cap):
    """Largest divisor of n that is a multiple of 8 and <= cap; else n (full)."""
    cap = max(1, min(n, cap))
    for d in range(cap, 0, -1):
        if n % d == 0 and d % 8 == 0:
            return d
    return n  # full-extent block is always a legal BlockSpec


# ----------------------------------------------------------------------------
# Kernel A: conv1 as a tiled matmul (im2col rows x 27) -> bias -> ReLU
# ----------------------------------------------------------------------------
def _conv1_matmul_kernel(x_ref, w_ref, b_ref, o_ref):
    acc = jnp.dot(x_ref[...], w_ref[...], preferred_element_type=jnp.float32)
    acc = jnp.maximum(acc + b_ref[...], 0.0)
    o_ref[...] = acc.astype(o_ref.dtype)


def conv1_matmul(cols, w, b, tile_m):
    # cols: (M_pad, 27) bf16, w: (27, C) bf16, b: (C,) f32 -> (M_pad, C) bf16
    M, K = cols.shape
    _, N = w.shape
    return pl.pallas_call(
        _conv1_matmul_kernel,
        out_shape=jax.ShapeDtypeStruct((M, N), jnp.bfloat16),
        grid=(M // tile_m,),
        in_specs=[
            pl.BlockSpec((tile_m, K), lambda i: (i, 0)),
            pl.BlockSpec((K, N), lambda i: (0, 0)),
            pl.BlockSpec((1, N), lambda i: (0, 0)),
        ],
        out_specs=pl.BlockSpec((tile_m, N), lambda i: (i, 0)),
        compiler_params=_compiler_params(1),
    )(cols, w, b.reshape(1, N))


# ----------------------------------------------------------------------------
# Kernel B: fused conv2 (3x3, stride 1) + ReLU + 1x1 head.
# The zero-padded conv1 activation stays resident in VMEM; the nine shifted
# views are sliced in-kernel (no HBM im2col), the 1x1 head is a channel
# reduction so the depth tile is stored lane-dense as (tile_h, Wo).
# ----------------------------------------------------------------------------
def _conv2_head_kernel(h1p_ref, w2_ref, b2_ref, w3_ref, b3_ref, o_ref, *, th, wo, c):
    i = pl.program_id(1)
    r0 = i * th
    m = th * wo
    acc = jnp.zeros((m, c), jnp.float32)
    for dy in range(3):
        for dx in range(3):
            v = h1p_ref[pl.ds(0, 1), pl.ds(r0 + dy, th), pl.ds(dx, wo), pl.ds(0, c)]
            v2 = v.reshape(m, c)                                   # bf16, leading-dim merge
            wk = w2_ref[pl.ds((dy * 3 + dx) * c, c), :]            # (c, c) bf16
            acc = acc + jnp.dot(v2, wk, preferred_element_type=jnp.float32)
    acc = jnp.maximum(acc + b2_ref[...], 0.0)                      # f32 epilogue
    # fused 1x1 head: multiply + lane reduction keeps the HBM store lane-dense
    depth = jnp.sum(acc.reshape(th, wo, c) * w3_ref[...], axis=-1) + b3_ref[...]
    o_ref[0] = depth


def conv2_head(h1p, w2m, b2, w3_vec, b3, Ho, Wo, C, th):
    # h1p: (B, Ho+2, Wo+2, C) bf16 (zero-padded conv1 output)
    B, Hp, Wp, _ = h1p.shape
    kernel = functools.partial(_conv2_head_kernel, th=th, wo=Wo, c=C)
    return pl.pallas_call(
        kernel,
        out_shape=jax.ShapeDtypeStruct((B, Ho, Wo), jnp.float32),
        grid=(B, Ho // th),
        in_specs=[
            pl.BlockSpec((1, Hp, Wp, C), lambda b, i: (b, 0, 0, 0)),
            pl.BlockSpec((9 * C, C), lambda b, i: (0, 0)),
            pl.BlockSpec((1, C), lambda b, i: (0, 0)),
            pl.BlockSpec((1, 1, C), lambda b, i: (0, 0, 0)),
            pl.BlockSpec((1, 1), lambda b, i: (0, 0)),
        ],
        out_specs=pl.BlockSpec((1, th, Wo), lambda b, i: (b, i, 0)),
        compiler_params=_compiler_params(2),
    )(h1p, w2m, b2.reshape(1, C), w3_vec.reshape(1, 1, C), b3.reshape(1, 1))


# ----------------------------------------------------------------------------
# Kernel C: separable bicubic upsample, row-tiled, Mw^T resident in VMEM.
# ----------------------------------------------------------------------------
def _bicubic_kernel(x_ref, mh_ref, mwt_ref, o_ref):
    tmp = jnp.dot(mh_ref[...], x_ref[0], preferred_element_type=jnp.float32)   # (toh, w)
    o_ref[0] = jnp.dot(tmp, mwt_ref[...], preferred_element_type=jnp.float32)  # (toh, out_w)


def _cubic_weights(t, A=-0.75):
    # PyTorch's bicubic convolution kernel (A = -0.75), 4 taps per output.
    def k1(x):  # |x| <= 1
        return ((A + 2.0) * x - (A + 3.0)) * x * x + 1.0

    def k2(x):  # 1 < |x| < 2
        return ((A * x - 5.0 * A) * x + 8.0 * A) * x - 4.0 * A

    return np.stack([k2(t + 1.0), k1(t), k1(1.0 - t), k2(2.0 - t)], axis=-1)


def _bicubic_matrix(in_size, out_size):
    # Dense (out, in) matrix replicating F.interpolate(..., mode='bicubic',
    # align_corners=False) along one axis (border-clamped taps).
    scale = in_size / out_size
    i = np.arange(out_size, dtype=np.float64)
    src = (i + 0.5) * scale - 0.5
    x0 = np.floor(src).astype(np.int64)
    t = src - x0
    wts = _cubic_weights(t)
    M = np.zeros((out_size, in_size), dtype=np.float64)
    for k in range(4):
        idx = np.clip(x0 - 1 + k, 0, in_size - 1)
        np.add.at(M, (np.arange(out_size), idx), wts[:, k])
    return M.astype(np.float32)


def bicubic_upsample(depth, out_h, out_w):
    # depth: (B, h, w) f32 -> (B, out_h, out_w) f32
    B, h, w = depth.shape
    mh = jnp.asarray(_bicubic_matrix(h, out_h))        # (out_h, h)
    mwt = jnp.asarray(_bicubic_matrix(w, out_w).T)     # (w, out_w)
    toh = _pick_row_tile(out_h, 256)
    return pl.pallas_call(
        _bicubic_kernel,
        out_shape=jax.ShapeDtypeStruct((B, out_h, out_w), jnp.float32),
        grid=(B, out_h // toh),
        in_specs=[
            pl.BlockSpec((1, h, w), lambda b, i: (b, 0, 0)),
            pl.BlockSpec((toh, h), lambda b, i: (i, 0)),
            pl.BlockSpec((w, out_w), lambda b, i: (0, 0)),
        ],
        out_specs=pl.BlockSpec((1, toh, out_w), lambda b, i: (b, i, 0)),
        compiler_params=_compiler_params(2),
    )(depth, mh, mwt)


# ----------------------------------------------------------------------------
# host-side layout glue
# ----------------------------------------------------------------------------
def _im2col_stride2(x, pad_value):
    # x: (B, H, W, C), 3x3 kernel, stride 2, pad 1 with `pad_value`.
    B, H, W, C = x.shape
    xp = jnp.pad(x, ((0, 0), (1, 1), (1, 1), (0, 0)), constant_values=pad_value)
    Ho = (H + 2 - 3) // 2 + 1
    Wo = (W + 2 - 3) // 2 + 1
    patches = []
    for dy in range(3):
        for dx in range(3):
            patches.append(xp[:, dy:dy + Ho * 2:2, dx:dx + Wo * 2:2, :])
    return jnp.concatenate(patches, axis=-1), Ho, Wo   # (B, Ho, Wo, 9*C)


# ----------------------------------------------------------------------------
# MidasDepth forward (synthetic stand-in for the hub-loaded DPT model)
# ----------------------------------------------------------------------------
class MidasDepthPallas:
    def __init__(self, key, hidden=16):
        # TODO(synk): real DPT_BEiT_L_512 weights come from torch.hub; this is a
        # deterministic synthetic depth network with the same I/O contract.
        k1, k2, k3, k4, k5, k6 = jax.random.split(key, 6)
        self.hidden = hidden
        self.w1 = jax.random.normal(k1, (3, 3, 3, hidden), jnp.float32) * 0.1
        self.b1 = jax.random.normal(k2, (hidden,), jnp.float32) * 0.01
        self.w2 = jax.random.normal(k3, (3, 3, hidden, hidden), jnp.float32) * 0.1
        self.b2 = jax.random.normal(k4, (hidden,), jnp.float32) * 0.01
        self.w3 = jax.random.normal(k5, (1, 1, hidden, 1), jnp.float32) * 0.1
        self.b3 = jax.random.normal(k6, (1,), jnp.float32) * 0.01

        # Fold dpt_transform normalization (x/255 - 0.5)/0.5 into conv1:
        #   conv1((2/255)*x - 1) == conv1_folded(x) when the raw image is padded
        #   with 127.5 (which normalizes to 0, matching the conv's zero pad).
        self.w1f = (self.w1 * (2.0 / 255.0)).reshape(27, hidden).astype(jnp.bfloat16)
        self.b1f = self.b1 - jnp.sum(self.w1, axis=(0, 1, 2))
        self.w2m = self.w2.reshape(9 * hidden, hidden).astype(jnp.bfloat16)
        self.w3v = self.w3.reshape(hidden)

        self._forward = jax.jit(self._forward_impl)

    def _forward_impl(self, image):
        # image: (H, W, 3) float in [0, 255] (torch path: .squeeze() then transform)
        image = jnp.squeeze(image)
        H, W, _ = image.shape
        C = self.hidden

        # TODO(synk): dpt_transform also resizes to a ~512px multiple-of-32 via
        # cv2 bicubic before the net; skipped at toy resolution, the
        # normalization itself is folded into conv1's weights (no extra pass).
        cols, Ho, Wo = _im2col_stride2(image[None].astype(jnp.float32), 127.5)
        M = Ho * Wo                                          # batch is always 1
        cols = cols.reshape(M, 27).astype(jnp.bfloat16)

        tile_m = 512 if M >= 512 else _round_up(M, 8)
        M_pad = _round_up(M, tile_m)
        if M_pad != M:
            cols = jnp.pad(cols, ((0, M_pad - M), (0, 0)))

        h1 = conv1_matmul(cols, self.w1f, self.b1f, tile_m)[:M]     # (M, C) bf16
        h1p = jnp.pad(h1.reshape(1, Ho, Wo, C),
                      ((0, 0), (1, 1), (1, 1), (0, 0)))             # zero pad, bf16

        th = _pick_row_tile(Ho, max(8, 2048 // Wo))
        depth = conv2_head(h1p, self.w2m, self.b2, self.w3v, self.b3,
                           Ho, Wo, C, th)                           # (1, H/2, W/2) f32

        # prediction.unsqueeze(1) -> bicubic to image.shape[-3:-1] -> [:, 0]
        return bicubic_upsample(depth, H, W)                        # (1, H, W) f32

    def __call__(self, image):
        return self._forward(image)


if __name__ == "__main__":
    key = jax.random.PRNGKey(0)
    k_img, k_params = jax.random.split(key)
    image = jax.random.uniform(k_img, (16, 16, 3), jnp.float32, 0.0, 255.0)

    model = MidasDepthPallas(k_params, hidden=16)
    pred = model(image)
    pred = jax.block_until_ready(pred)

    assert pred.shape == (1, 16, 16), pred.shape
    assert jnp.isfinite(pred).all()
    print("KERNEL_OK")
</pallas_src>

<mosaic_0001>
module attributes {stable_mosaic.version = 11 : i64} {
  func.func @_conv1_matmul_kernel(%arg0: i32, %arg1: memref<64x27xbf16, #tpu.memory_space<vmem>>, %arg2: memref<27x16xbf16, #tpu.memory_space<vmem>>, %arg3: memref<1x16xf32, #tpu.memory_space<vmem>>, %arg4: memref<64x16xbf16, #tpu.memory_space<vmem>>) attributes {dimension_semantics = [#tpu.dimension_semantics<parallel>], iteration_bounds = array<i64: 1>, scalar_prefetch = 0 : i64, scratch_operands = 0 : i64, tpu.core_type = #tpu.core_type<tc>, window_params = [{transform_indices = @transform_0, window_bounds = array<i64: 64, 27>}, {pipeline_mode = #tpu.pipeline_mode<synchronous>, transform_indices = @transform_1, window_bounds = array<i64: 27, 16>}, {pipeline_mode = #tpu.pipeline_mode<synchronous>, transform_indices = @transform_2, window_bounds = array<i64: 1, 16>}, {transform_indices = @transform_3, window_bounds = array<i64: 64, 16>}]} {
    %c0 = arith.constant 0 : index
    %c0_0 = arith.constant 0 : index
    %0 = vector.load %arg1[%c0, %c0_0] : memref<64x27xbf16, #tpu.memory_space<vmem>>, vector<64x27xbf16>
    %c0_1 = arith.constant 0 : index
    %c0_2 = arith.constant 0 : index
    %1 = vector.load %arg2[%c0_1, %c0_2] : memref<27x16xbf16, #tpu.memory_space<vmem>>, vector<27x16xbf16>
    %cst = arith.constant dense<0.000000e+00> : vector<64x16xf32>
    %2 = tpu.matmul %0, %1, %cst {dimension_numbers = #tpu.dot_dimension_numbers<[1], [0], [0], [1], [0, 0, 1, 1], [], []>} : vector<64x27xbf16>, vector<27x16xbf16>, vector<64x16xf32> -> vector<64x16xf32>
    %c0_3 = arith.constant 0 : index
    %c0_4 = arith.constant 0 : index
    %3 = vector.load %arg3[%c0_3, %c0_4] : memref<1x16xf32, #tpu.memory_space<vmem>>, vector<1x16xf32>
    %4 = vector.broadcast %3 : vector<1x16xf32> to vector<64x16xf32>
    %5 = arith.addf %2, %4 : vector<64x16xf32>
    %cst_5 = arith.constant 0.000000e+00 : f32
    %6 = vector.broadcast %cst_5 : f32 to vector<64x16xf32>
    %7 = arith.maximumf %5, %6 : vector<64x16xf32>
    %8 = arith.truncf %7 : vector<64x16xf32> to vector<64x16xbf16>
    %c0_6 = arith.constant 0 : index
    %c0_7 = arith.constant 0 : index
    %9 = vector.load %arg4[%c0_6, %c0_7] : memref<64x16xbf16, #tpu.memory_space<vmem>>, vector<64x16xbf16>
    tpu.vector_store %arg4[%c0_6, %c0_7], %8 {strides = array<i32>} : memref<64x16xbf16, #tpu.memory_space<vmem>>, vector<64x16xbf16>,
    return
  }
  func.func @transform_0(%arg0: i32) -> (i32, i32) {
    %c0_i32 = arith.constant 0 : i32
    %c0_i32_0 = arith.constant 0 : i32
    return %arg0, %c0_i32 : i32, i32
  }
  func.func @transform_1(%arg0: i32) -> (i32, i32) {
    %c0_i32 = arith.constant 0 : i32
    %c0_i32_0 = arith.constant 0 : i32
    %c0_i32_1 = arith.constant 0 : i32
    return %c0_i32, %c0_i32_0 : i32, i32
  }
  func.func @transform_2(%arg0: i32) -> (i32, i32) {
    %c0_i32 = arith.constant 0 : i32
    %c0_i32_0 = arith.constant 0 : i32
    %c0_i32_1 = arith.constant 0 : i32
    return %c0_i32, %c0_i32_0 : i32, i32
  }
  func.func @transform_3(%arg0: i32) -> (i32, i32) {
    %c0_i32 = arith.constant 0 : i32
    %c0_i32_0 = arith.constant 0 : i32
    return %arg0, %c0_i32 : i32, i32
  }
}

module attributes {stable_mosaic.version = 11 : i64} {
  func.func @_conv2_head_kernel(%arg0: i32, %arg1: i32, %arg2: memref<1x10x10x16xbf16, #tpu.memory_space<vmem>>, %arg3: memref<144x16xbf16, #tpu.memory_space<vmem>>, %arg4: memref<1x16xf32, #tpu.memory_space<vmem>>, %arg5: memref<1x1x16xf32, #tpu.memory_space<vmem>>, %arg6: memref<1x1xf32, #tpu.memory_space<vmem>>, %arg7: memref<1x8x8xf32, #tpu.memory_space<vmem>>) attributes {dimension_semantics = [#tpu.dimension_semantics<parallel>, #tpu.dimension_semantics<parallel>], iteration_bounds = array<i64: 1, 1>, scalar_prefetch = 0 : i64, scratch_operands = 0 : i64, tpu.core_type = #tpu.core_type<tc>, window_params = [{transform_indices = @transform_0, window_bounds = array<i64: 1, 10, 10, 16>}, {pipeline_mode = #tpu.pipeline_mode<synchronous>, transform_indices = @transform_1, window_bounds = array<i64: 144, 16>}, {pipeline_mode = #tpu.pipeline_mode<synchronous>, transform_indices = @transform_2, window_bounds = array<i64: 1, 16>}, {pipeline_mode = #tpu.pipeline_mode<synchronous>, transform_indices = @transform_3, window_bounds = array<i64: 1, 1, 16>}, {pipeline_mode = #tpu.pipeline_mode<synchronous>, transform_indices = @transform_4, window_bounds = array<i64: 1, 1>}, {transform_indices = @transform_5, window_bounds = array<i64: 1, 8, 8>}]} {
    %c8_i32 = arith.constant 8 : i32
    %0 = arith.muli %arg1, %c8_i32 : i32
    %cst = arith.constant 0.000000e+00 : f32
    %1 = vector.broadcast %cst : f32 to vector<64x16xf32>
    %c0_i32 = arith.constant 0 : i32
    %2 = arith.addi %0, %c0_i32 : i32
    %c0 = arith.constant 0 : index
    %3 = arith.index_cast %2 : i32 to index
    %c0_0 = arith.constant 0 : index
    %c0_1 = arith.constant 0 : index
    %4 = vector.load %arg2[%c0, %3, %c0_0, %c0_1] : memref<1x10x10x16xbf16, #tpu.memory_space<vmem>>, vector<1x8x8x16xbf16>
    %5 = vector.shape_cast %4 : vector<1x8x8x16xbf16> to vector<64x16xbf16>
    %c0_2 = arith.constant 0 : index
    %c0_3 = arith.constant 0 : index
    %6 = vector.load %arg3[%c0_2, %c0_3] : memref<144x16xbf16, #tpu.memory_space<vmem>>, vector<16x16xbf16>
    %cst_4 = arith.constant dense<0.000000e+00> : vector<64x16xf32>
    %7 = tpu.matmul %5, %6, %cst_4 {dimension_numbers = #tpu.dot_dimension_numbers<[1], [0], [0], [1], [0, 0, 1, 1], [], []>} : vector<64x16xbf16>, vector<16x16xbf16>, vector<64x16xf32> -> vector<64x16xf32>
    %8 = arith.addf %1, %7 : vector<64x16xf32>
    %c0_i32_5 = arith.constant 0 : i32
    %9 = arith.addi %0, %c0_i32_5 : i32
    %c0_6 = arith.constant 0 : index
    %10 = arith.index_cast %9 : i32 to index
    %c1 = arith.constant 1 : index
    %c0_7 = arith.constant 0 : index
    %11 = vector.load %arg2[%c0_6, %10, %c1, %c0_7] : memref<1x10x10x16xbf16, #tpu.memory_space<vmem>>, vector<1x8x8x16xbf16>
    %12 = vector.shape_cast %11 : vector<1x8x8x16xbf16> to vector<64x16xbf16>
    %c16 = arith.constant 16 : index
    %c0_8 = arith.constant 0 : index
    %13 = vector.load %arg3[%c16, %c0_8] : memref<144x16xbf16, #tpu.memory_space<vmem>>, vector<16x16xbf16>
    %cst_9 = arith.constant dense<0.000000e+00> : vector<64x16xf32>
    %14 = tpu.matmul %12, %13, %cst_9 {dimension_numbers = #tpu.dot_dimension_numbers<[1], [0], [0], [1], [0, 0, 1, 1], [], []>} : vector<64x16xbf16>, vector<16x16xbf16>, vector<64x16xf32> -> vector<64x16xf32>
    %15 = arith.addf %8, %14 : vector<64x16xf32>
    %c0_i32_10 = arith.constant 0 : i32
    %16 = arith.addi %0, %c0_i32_10 : i32
    %c0_11 = arith.constant 0 : index
    %17 = arith.index_cast %16 : i32 to index
    %c2 = arith.constant 2 : index
    %c0_12 = arith.constant 0 : index
    %18 = vector.load %arg2[%c0_11, %17, %c2, %c0_12] : memref<1x10x10x16xbf16, #tpu.memory_space<vmem>>, vector<1x8x8x16xbf16>
    %19 = vector.shape_cast %18 : vector<1x8x8x16xbf16> to vector<64x16xbf16>
    %c32 = arith.constant 32 : index
    %c0_13 = arith.constant 0 : index
    %20 = vector.load %arg3[%c32, %c0_13] : memref<144x16xbf16, #tpu.memory_space<vmem>>, vector<16x16xbf16>
    %cst_14 = arith.constant dense<0.000000e+00> : vector<64x16xf32>
    %21 = tpu.matmul %19, %20, %cst_14 {dimension_numbers = #tpu.dot_dimension_numbers<[1], [0], [0], [1], [0, 0, 1, 1], [], []>} : vector<64x16xbf16>, vector<16x16xbf16>, vector<64x16xf32> -> vector<64x16xf32>
    %22 = arith.addf %15, %21 : vector<64x16xf32>
    %c1_i32 = arith.constant 1 : i32
    %23 = arith.addi %0, %c1_i32 : i32
    %c0_15 = arith.constant 0 : index
    %24 = arith.index_cast %23 : i32 to index
    %c0_16 = arith.constant 0 : index
    %c0_17 = arith.constant 0 : index
    %25 = vector.load %arg2[%c0_15, %24, %c0_16, %c0_17] : memref<1x10x10x16xbf16, #tpu.memory_space<vmem>>, vector<1x8x8x16xbf16>
    %26 = vector.shape_cast %25 : vector<1x8x8x16xbf16> to vector<64x16xbf16>
    %c48 = arith.constant 48 : index
    %c0_18 = arith.constant 0 : index
    %27 = vector.load %arg3[%c48, %c0_18] : memref<144x16xbf16, #tpu.memory_space<vmem>>, vector<16x16xbf16>
    %cst_19 = arith.constant dense<0.000000e+00> : vector<64x16xf32>
    %28 = tpu.matmul %26, %27, %cst_19 {dimension_numbers = #tpu.dot_dimension_numbers<[1], [0], [0], [1], [0, 0, 1, 1], [], []>} : vector<64x16xbf16>, vector<16x16xbf16>, vector<64x16xf32> -> vector<64x16xf32>
    %29 = arith.addf %22, %28 : vector<64x16xf32>
    %c1_i32_20 = arith.constant 1 : i32
    %30 = arith.addi %0, %c1_i32_20 : i32
    %c0_21 = arith.constant 0 : index
    %31 = arith.index_cast %30 : i32 to index
    %c1_22 = arith.constant 1 : index
    %c0_23 = arith.constant 0 : index
    %32 = vector.load %arg2[%c0_21, %31, %c1_22, %c0_23] : memref<1x10x10x16xbf16, #tpu.memory_space<vmem>>, vector<1x8x8x16xbf16>
    %33 = vector.shape_cast %32 : vector<1x8x8x16xbf16> to vector<64x16xbf16>
    %c64 = arith.constant 64 : index
    %c0_24 = arith.constant 0 : index
    %34 = vector.load %arg3[%c64, %c0_24] : memref<144x16xbf16, #tpu.memory_space<vmem>>, vector<16x16xbf16>
    %cst_25 = arith.constant dense<0.000000e+00> : vector<64x16xf32>
    %35 = tpu.matmul %33, %34, %cst_25 {dimension_numbers = #tpu.dot_dimension_numbers<[1], [0], [0], [1], [0, 0, 1, 1], [], []>} : vector<64x16xbf16>, vector<16x16xbf16>, vector<64x16xf32> -> vector<64x16xf32>
    %36 = arith.addf %29, %35 : vector<64x16xf32>
    %c1_i32_26 = arith.constant 1 : i32
    %37 = arith.addi %0, %c1_i32_26 : i32
    %c0_27 = arith.constant 0 : index
    %38 = arith.index_cast %37 : i32 to index
    %c2_28 = arith.constant 2 : index
    %c0_29 = arith.constant 0 : index
    %39 = vector.load %arg2[%c0_27, %38, %c2_28, %c0_29] : memref<1x10x10x16xbf16, #tpu.memory_space<vmem>>, vector<1x8x8x16xbf16>
    %40 = vector.shape_cast %39 : vector<1x8x8x16xbf16> to vector<64x16xbf16>
    %c80 = arith.constant 80 : index
    %c0_30 = arith.constant 0 : index
    %41 = vector.load %arg3[%c80, %c0_30] : memref<144x16xbf16, #tpu.memory_space<vmem>>, vector<16x16xbf16>
    %cst_31 = arith.constant dense<0.000000e+00> : vector<64x16xf32>
    %42 = tpu.matmul %40, %41, %cst_31 {dimension_numbers = #tpu.dot_dimension_numbers<[1], [0], [0], [1], [0, 0, 1, 1], [], []>} : vector<64x16xbf16>, vector<16x16xbf16>, vector<64x16xf32> -> vector<64x16xf32>
    %43 = arith.addf %36, %42 : vector<64x16xf32>
    %c2_i32 = arith.constant 2 : i32
    %44 = arith.addi %0, %c2_i32 : i32
    %c0_32 = arith.constant 0 : index
    %45 = arith.index_cast %44 : i32 to index
    %c0_33 = arith.constant 0 : index
    %c0_34 = arith.constant 0 : index
    %46 = vector.load %arg2[%c0_32, %45, %c0_33, %c0_34] : memref<1x10x10x16xbf16, #tpu.memory_space<vmem>>, vector<1x8x8x16xbf16>
    %47 = vector.shape_cast %46 : vector<1x8x8x16xbf16> to vector<64x16xbf16>
    %c96 = arith.constant 96 : index
    %c0_35 = arith.constant 0 : index
    %48 = vector.load %arg3[%c96, %c0_35] : memref<144x16xbf16, #tpu.memory_space<vmem>>, vector<16x16xbf16>
    %cst_36 = arith.constant dense<0.000000e+00> : vector<64x16xf32>
    %49 = tpu.matmul %47, %48, %cst_36 {dimension_numbers = #tpu.dot_dimension_numbers<[1], [0], [0], [1], [0, 0, 1, 1], [], []>} : vector<64x16xbf16>, vector<16x16xbf16>, vector<64x16xf32> -> vector<64x16xf32>
    %50 = arith.addf %43, %49 : vector<64x16xf32>
    %c2_i32_37 = arith.constant 2 : i32
    %51 = arith.addi %0, %c2_i32_37 : i32
    %c0_38 = arith.constant 0 : index
    %52 = arith.index_cast %51 : i32 to index
    %c1_39 = arith.constant 1 : index
    %c0_40 = arith.constant 0 : index
    %53 = vector.load %arg2[%c0_38, %52, %c1_39, %c0_40] : memref<1x10x10x16xbf16, #tpu.memory_space<vmem>>, vector<1x8x8x16xbf16>
    %54 = vector.shape_cast %53 : vector<1x8x8x16xbf16> to vector<64x16xbf16>
    %c112 = arith.constant 112 : index
    %c0_41 = arith.constant 0 : index
    %55 = vector.load %arg3[%c112, %c0_41] : memref<144x16xbf16, #tpu.memory_space<vmem>>, vector<16x16xbf16>
    %cst_42 = arith.constant dense<0.000000e+00> : vector<64x16xf32>
    %56 = tpu.matmul %54, %55, %cst_42 {dimension_numbers = #tpu.dot_dimension_numbers<[1], [0], [0], [1], [0, 0, 1, 1], [], []>} : vector<64x16xbf16>, vector<16x16xbf16>, vector<64x16xf32> -> vector<64x16xf32>
    %57 = arith.addf %50, %56 : vector<64x16xf32>
    %c2_i32_43 = arith.constant 2 : i32
    %58 = arith.addi %0, %c2_i32_43 : i32
    %c0_44 = arith.constant 0 : index
    %59 = arith.index_cast %58 : i32 to index
    %c2_45 = arith.constant 2 : index
    %c0_46 = arith.constant 0 : index
    %60 = vector.load %arg2[%c0_44, %59, %c2_45, %c0_46] : memref<1x10x10x16xbf16, #tpu.memory_space<vmem>>, vector<1x8x8x16xbf16>
    %61 = vector.shape_cast %60 : vector<1x8x8x16xbf16> to vector<64x16xbf16>
    %c128 = arith.constant 128 : index
    %c0_47 = arith.constant 0 : index
    %62 = vector.load %arg3[%c128, %c0_47] : memref<144x16xbf16, #tpu.memory_space<vmem>>, vector<16x16xbf16>
    %cst_48 = arith.constant dense<0.000000e+00> : vector<64x16xf32>
    %63 = tpu.matmul %61, %62, %cst_48 {dimension_numbers = #tpu.dot_dimension_numbers<[1], [0], [0], [1], [0, 0, 1, 1], [], []>} : vector<64x16xbf16>, vector<16x16xbf16>, vector<64x16xf32> -> vector<64x16xf32>
    %64 = arith.addf %57, %63 : vector<64x16xf32>
    %c0_49 = arith.constant 0 : index
    %c0_50 = arith.constant 0 : index
    %65 = vector.load %arg4[%c0_49, %c0_50] : memref<1x16xf32, #tpu.memory_space<vmem>>, vector<1x16xf32>
    %66 = vector.broadcast %65 : vector<1x16xf32> to vector<64x16xf32>
    %67 = arith.addf %64, %66 : vector<64x16xf32>
    %cst_51 = arith.constant 0.000000e+00 : f32
    %68 = vector.broadcast %cst_51 : f32 to vector<64x16xf32>
    %69 = arith.maximumf %67, %68 : vector<64x16xf32>
    %70 = vector.shape_cast %69 : vector<64x16xf32> to vector<8x8x16xf32>
    %c0_52 = arith.constant 0 : index
    %c0_53 = arith.constant 0 : index
    %c0_54 = arith.constant 0 : index
    %71 = vector.load %arg5[%c0_52, %c0_53, %c0_54] : memref<1x1x16xf32, #tpu.memory_space<vmem>>, vector<1x1x16xf32>
    %72 = vector.broadcast %71 : vector<1x1x16xf32> to vector<8x8x16xf32>
    %73 = arith.mulf %70, %72 : vector<8x8x16xf32>
    %cst_55 = arith.constant dense<0.000000e+00> : vector<8x8xf32>
    %74 = vector.multi_reduction <add>, %73, %cst_55 [2] : vector<8x8x16xf32> to vector<8x8xf32>
    %c0_56 = arith.constant 0 : index
    %c0_57 = arith.constant 0 : index
    %75 = vector.load %arg6[%c0_56, %c0_57] : memref<1x1xf32, #tpu.memory_space<vmem>>, vector<1x1xf32>
    %76 = vector.broadcast %75 : vector<1x1xf32> to vector<8x8xf32>
    %77 = arith.addf %74, %76 : vector<8x8xf32>
    %c0_58 = arith.constant 0 : index
    %c0_59 = arith.constant 0 : index
    %c0_60 = arith.constant 0 : index
    %78 = vector.load %arg7[%c0_58, %c0_59, %c0_60] : memref<1x8x8xf32, #tpu.memory_space<vmem>>, vector<1x8x8xf32>
    %79 = vector.shape_cast %78 : vector<1x8x8xf32> to vector<8x8xf32>
    %80 = vector.shape_cast %77 : vector<8x8xf32> to vector<1x8x8xf32>
    tpu.vector_store %arg7[%c0_58, %c0_59, %c0_60], %80 {strides = array<i32>} : memref<1x8x8xf32, #tpu.memory_space<vmem>>, vector<1x8x8xf32>,
    return
  }
  func.func @transform_0(%arg0: i32, %arg1: i32) -> (i32, i32, i32, i32) {
    %c0_i32 = arith.constant 0 : i32
    %c0_i32_0 = arith.constant 0 : i32
    %c0_i32_1 = arith.constant 0 : i32
    %c0_i32_2 = arith.constant 0 : i32
    return %arg0, %c0_i32, %c0_i32_0, %c0_i32_1 : i32, i32, i32, i32
  }
  func.func @transform_1(%arg0: i32, %arg1: i32) -> (i32, i32) {
    %c0_i32 = arith.constant 0 : i32
    %c0_i32_0 = arith.constant 0 : i32
    %c0_i32_1 = arith.constant 0 : i32
    return %c0_i32, %c0_i32_0 : i32, i32
  }
  func.func @transform_2(%arg0: i32, %arg1: i32) -> (i32, i32) {
    %c0_i32 = arith.constant 0 : i32
    %c0_i32_0 = arith.constant 0 : i32
    %c0_i32_1 = arith.constant 0 : i32
    return %c0_i32, %c0_i32_0 : i32, i32
  }
  func.func @transform_3(%arg0: i32, %arg1: i32) -> (i32, i32, i32) {
    %c0_i32 = arith.constant 0 : i32
    %c0_i32_0 = arith.constant 0 : i32
    %c0_i32_1 = arith.constant 0 : i32
    %c0_i32_2 = arith.constant 0 : i32
    return %c0_i32, %c0_i32_0, %c0_i32_1 : i32, i32, i32
  }
  func.func @transform_4(%arg0: i32, %arg1: i32) -> (i32, i32) {
    %c0_i32 = arith.constant 0 : i32
    %c0_i32_0 = arith.constant 0 : i32
    %c0_i32_1 = arith.constant 0 : i32
    return %c0_i32, %c0_i32_0 : i32, i32
  }
  func.func @transform_5(%arg0: i32, %arg1: i32) -> (i32, i32, i32) {
    %c0_i32 = arith.constant 0 : i32
    %c0_i32_0 = arith.constant 0 : i32
    return %arg0, %arg1, %c0_i32 : i32, i32, i32
  }
}

module attributes {stable_mosaic.version = 11 : i64} {
  func.func @_bicubic_kernel(%arg0: i32, %arg1: i32, %arg2: memref<1x8x8xf32, #tpu.memory_space<vmem>>, %arg3: memref<16x8xf32, #tpu.memory_space<vmem>>, %arg4: memref<8x16xf32, #tpu.memory_space<vmem>>, %arg5: memref<1x16x16xf32, #tpu.memory_space<vmem>>) attributes {dimension_semantics = [#tpu.dimension_semantics<parallel>, #tpu.dimension_semantics<parallel>], iteration_bounds = array<i64: 1, 1>, scalar_prefetch = 0 : i64, scratch_operands = 0 : i64, tpu.core_type = #tpu.core_type<tc>, window_params = [{transform_indices = @transform_0, window_bounds = array<i64: 1, 8, 8>}, {transform_indices = @transform_1, window_bounds = array<i64: 16, 8>}, {pipeline_mode = #tpu.pipeline_mode<synchronous>, transform_indices = @transform_2, window_bounds = array<i64: 8, 16>}, {transform_indices = @transform_3, window_bounds = array<i64: 1, 16, 16>}]} {
    %c0 = arith.constant 0 : index
    %c0_0 = arith.constant 0 : index
    %0 = vector.load %arg3[%c0, %c0_0] : memref<16x8xf32, #tpu.memory_space<vmem>>, vector<16x8xf32>
    %c0_1 = arith.constant 0 : index
    %c0_2 = arith.constant 0 : index
    %c0_3 = arith.constant 0 : index
    %1 = vector.load %arg2[%c0_1, %c0_2, %c0_3] : memref<1x8x8xf32, #tpu.memory_space<vmem>>, vector<1x8x8xf32>
    %2 = vector.shape_cast %1 : vector<1x8x8xf32> to vector<8x8xf32>
    %cst = arith.constant dense<0.000000e+00> : vector<16x8xf32>
    %3 = tpu.matmul %0, %2, %cst {dimension_numbers = #tpu.dot_dimension_numbers<[1], [0], [0], [1], [0, 0, 1, 1], [], []>} : vector<16x8xf32>, vector<8x8xf32>, vector<16x8xf32> -> vector<16x8xf32>
    %c0_4 = arith.constant 0 : index
    %c0_5 = arith.constant 0 : index
    %4 = vector.load %arg4[%c0_4, %c0_5] : memref<8x16xf32, #tpu.memory_space<vmem>>, vector<8x16xf32>
    %cst_6 = arith.constant dense<0.000000e+00> : vector<16x16xf32>
    %5 = tpu.matmul %3, %4, %cst_6 {dimension_numbers = #tpu.dot_dimension_numbers<[1], [0], [0], [1], [0, 0, 1, 1], [], []>} : vector<16x8xf32>, vector<8x16xf32>, vector<16x16xf32> -> vector<16x16xf32>
    %c0_7 = arith.constant 0 : index
    %c0_8 = arith.constant 0 : index
    %c0_9 = arith.constant 0 : index
    %6 = vector.load %arg5[%c0_7, %c0_8, %c0_9] : memref<1x16x16xf32, #tpu.memory_space<vmem>>, vector<1x16x16xf32>
    %7 = vector.shape_cast %6 : vector<1x16x16xf32> to vector<16x16xf32>
    %8 = vector.shape_cast %5 : vector<16x16xf32> to vector<1x16x16xf32>
    tpu.vector_store %arg5[%c0_7, %c0_8, %c0_9], %8 {strides = array<i32>} : memref<1x16x16xf32, #tpu.memory_space<vmem>>, vector<1x16x16xf32>,
    return
  }
  func.func @transform_0(%arg0: i32, %arg1: i32) -> (i32, i32, i32) {
    %c0_i32 = arith.constant 0 : i32
    %c0_i32_0 = arith.constant 0 : i32
    %c0_i32_1 = arith.constant 0 : i32
    return %arg0, %c0_i32, %c0_i32_0 : i32, i32, i32
  }
  func.func @transform_1(%arg0: i32, %arg1: i32) -> (i32, i32) {
    %c0_i32 = arith.constant 0 : i32
    %c0_i32_0 = arith.constant 0 : i32
    return %arg1, %c0_i32 : i32, i32
  }
  func.func @transform_2(%arg0: i32, %arg1: i32) -> (i32, i32) {
    %c0_i32 = arith.constant 0 : i32
    %c0_i32_0 = arith.constant 0 : i32
    %c0_i32_1 = arith.constant 0 : i32
    return %c0_i32, %c0_i32_0 : i32, i32
  }
  func.func @transform_3(%arg0: i32, %arg1: i32) -> (i32, i32, i32) {
    %c0_i32 = arith.constant 0 : i32
    %c0_i32_0 = arith.constant 0 : i32
    return %arg0, %arg1, %c0_i32 : i32, i32, i32
  }
}

</mosaic_0001>

<llo_original>
// kernel: _forward_impl.3
$region0: #{_forward_impl.3}
  #allocation0 [shape = 'u32[]', space=smem, size = 0x4, offset = 0x4, fixed_abs, tag = 'smem constant byte address 0x4 - core index']
  #allocation1 [shape = 'u32[144,128]{1,0:T(1,128)}', space=vmem, size = 0x12000, scoped, tag = 'internal scratch']
  %s0 = inlined_call_operand.vmem [shape: bf16[64,27], index: 0, kind: input, shape index: {}]
  %s1 = inlined_call_operand.vmem [shape: bf16[27,16], index: 1, kind: input, shape index: {}]
  %s2 = inlined_call_operand.vmem [shape: f32[1,16], index: 2, kind: input, shape index: {}]
  %s3 = inlined_call_operand.vmem [shape: bf16[64,16], index: 3, kind: output, shape index: {}]
  %s4 = sld [smem:[#allocation0]]
  $region22: #{_forward_impl.3} parent=0
    _
  %s6 = ssub.s32 1, %s4
  %s7 = scalar_select 0, %s6, %s4
  // Predicated region
  $region2: #{_forward_impl.3} parent=0 // pred_check
    _
  $region3: #{_forward_impl.3} parent=0 // pred_check_branch
    %9 = sbr.rel (0) target = $region5
  $region4: #{_forward_impl.3} parent=0 // pred_region
    _
  $region5: #{_forward_impl.3} parent=0 // pred_fallthru
    _
  // Predicated region
  $region6: #{_forward_impl.3} parent=0 // pred_check
    _
  $region7: #{_forward_impl.3} parent=0 // pred_check_branch
    %11 = sbr.rel (0) target = $region9
  $region8: #{_forward_impl.3} parent=0 // pred_region
    _
  $region9: #{_forward_impl.3} parent=0 // pred_fallthru
    _
  // Predicated region
  $region10: #{_forward_impl.3} parent=0 // pred_check
    _
  $region11: #{_forward_impl.3} parent=0 // pred_check_branch
    %13 = sbr.rel (0) target = $region13
  $region12: #{_forward_impl.3} parent=0 // pred_region
    _
  $region13: #{_forward_impl.3} parent=0 // pred_fallthru
    _
  %v15 = vld [vmem:[%s0] sm:$0xf]
  %v16 = vld [vmem:[%s0 + $0x4] sm:$0xf]
  %v17 = vld [vmem:[%s0 + $0x8] sm:$0xf]
  %v18 = vld [vmem:[%s0 + $0xc] sm:$0xf]
  %v19 = vld [vmem:[%s0 + $0x10] sm:$0xf]
  %v20 = vld [vmem:[%s0 + $0x14] sm:$0xf]
  %v21 = vld [vmem:[%s0 + $0x18] sm:$0xf]
  %v22 = vld [vmem:[%s0 + $0x1c] sm:$0xf]
  %v23 = vld [vmem:[%s1] sm:$0xf]
  %v24 = vld [vmem:[%s1 + $0x4] sm:$0xf]
  %v25 = vld [vmem:[%s1 + $0x8] sm:$0xf]
  %v26 = vld [vmem:[%s1 + $0xc] sm:$0x3]
  %v27 = vld [vmem:[%s2] sm:$0x1]
  %v29 = vlaneseq
  %v30 = vshrl.u32 %v29, 7
  %v31 = vsub.s32 0, %v30
  %v32 = vrot.slane %v27, %v31
  %v42 = vunpack.c.l.b16 %v15
  %v43 = vunpack.c.l.b16 %v16
  %v44 = vunpack.c.l.b16 %v17
  %v45 = vunpack.c.l.b16 %v18
  %v46 = vunpack.c.l.b16 %v19
  %v47 = vunpack.c.l.b16 %v20
  %v48 = vunpack.c.l.b16 %v21
  %v49 = vunpack.c.l.b16 %v22
  %v50 = vpack.c.b16 %v43, %v42
  %v51 = vpack.c.b16 %v45, %v44
  %v52 = vpack.c.b16 %v47, %v46
  %v53 = vpack.c.b16 %v49, %v48
  %v58 = vunpack.c.l.b16 %v23
  %v59 = vunpack.c.l.b16 %v24
  %v60 = vunpack.c.l.b16 %v25
  %v61 = vunpack.c.l.b16 %v26
  %v62 = vpack.c.b16 %v59, %v58
  %v63 = vpack.c.b16 %v61, %v60
  %vm65 = vcmask 220160
  %v67 = vsel %vm65, %v50, 0
  %v70 = vsel %vm65, %v51, 0
  %v73 = vsel %vm65, %v52, 0
  %v76 = vsel %vm65, %v53, 0
  %vm78 = vcmask 1044480
  %vm79 = vcmask 1045504
  %v80 = vsel %vm78, 4294967295, 65535
  %v81 = vsel %vm79, %v80, 0
  %v83 = vand.u32 %v63, %v81
  %85 = vmatprep.subr.bf16.mxu0 0
  %86 = vmatpush1.bf16.msra.mxu0 0
  %87 = vmatprep.subr.bf16.mxu0 0
  %88 = vmatpush1.bf16.msra.mxu0 0
  %89 = vmatprep.subr.bf16.mxu0 0
  %90 = vmatpush1.bf16.msra.mxu0 0
  %91 = vmatprep.subr.bf16.mxu0 0
  %92 = vmatpush1.bf16.msra.mxu0 0
  %93 = vmatprep.subr.bf16.mxu0 0
  %94 = vmatpush1.bf16.msra.mxu0 0
  %95 = vmatprep.subr.bf16.mxu0 0
  %96 = vmatpush1.bf16.msra.mxu0 0
  %97 = vmatprep.subr.bf16.mxu0 0
  %98 = vmatpush1.bf16.msra.mxu0 %v83
  %99 = vmatprep.subr.bf16.mxu0 0
  %100 = vmatpush1.bf16.msra.mxu0 %v62
  %101 = vmatprep.subr.bf16.mxu0 0
  %102 = vmatpush2.bf16.msra.mxu0 0
  %103 = vmatprep.subr.bf16.mxu0 0
  %104 = vmatpush2.bf16.msra.mxu0 0
  %105 = vmatprep.subr.bf16.mxu0 0
  %106 = vmatpush2.bf16.msra.mxu0 0
  %107 = vmatprep.subr.bf16.mxu0 0
  %108 = vmatpush2.bf16.msra.mxu0 0
  %109 = vmatprep.subr.bf16.mxu0 0
  %110 = vmatpush2.bf16.msra.mxu0 0
  %111 = vmatprep.subr.bf16.mxu0 0
  %112 = vmatpush2.bf16.msra.mxu0 0
  %113 = vmatprep.subr.bf16.mxu0 0
  %114 = vmatpush2.bf16.msra.mxu0 0
  %115 = vmatprep.subr.bf16.mxu0 0
  %116 = vmatpush2.bf16.msra.mxu0 0
  %117 = vmatprep.mubr.bf16.mxu0 0
  %118 = vmatmul.mubr.bf16.gmra.mxu0 %v67
  %v119 = vpop.f32.mrf.mxu0
  %v120 = vadd.f32 %v32, %v119
  %v121 = vpop.f32.mrf.mxu0
  %v122 = vpop.f32.mrf.mxu0
  %v123 = vadd.f32 %v32, %v122
  %v124 = vpop.f32.mrf.mxu0
  %125 = vmatprep.mubr.bf16.mxu0 0
  %126 = vmatmul.mubr.bf16.gmra.mxu0 %v70
  %v127 = vpop.f32.mrf.mxu0
  %v128 = vadd.f32 %v32, %v127
  %v129 = vpop.f32.mrf.mxu0
  %v130 = vpop.f32.mrf.mxu0
  %v131 = vadd.f32 %v32, %v130
  %v132 = vpop.f32.mrf.mxu0
  %133 = vmatprep.mubr.bf16.mxu0 0
  %134 = vmatmul.mubr.bf16.gmra.mxu0 %v73
  %v135 = vpop.f32.mrf.mxu0
  %v136 = vadd.f32 %v32, %v135
  %v137 = vpop.f32.mrf.mxu0
  %v138 = vpop.f32.mrf.mxu0
  %v139 = vadd.f32 %v32, %v138
  %v140 = vpop.f32.mrf.mxu0
  %141 = vmatprep.mubr.bf16.mxu0 0
  %142 = vmatmul.mubr.bf16.gmra.mxu0 %v76
  %v143 = vpop.f32.mrf.mxu0
  %v144 = vadd.f32 %v32, %v143
  %v145 = vpop.f32.mrf.mxu0
  %v146 = vpop.f32.mrf.mxu0
  %v147 = vadd.f32 %v32, %v146
  %v148 = vpop.f32.mrf.mxu0
  %149 = vdwg.mxu0
  %v150 = vmax.f32 %v120, 0.0
  %v151 = vmax.f32 %v123, 0.0
  %v152 = vmax.f32 %v128, 0.0
  %v153 = vmax.f32 %v131, 0.0
  %v154 = vmax.f32 %v136, 0.0
  %v155 = vmax.f32 %v139, 0.0
  %v156 = vmax.f32 %v144, 0.0
  %v157 = vmax.f32 %v147, 0.0
  %v158 = vpack.c.bf16 %v151, %v150
  %v159 = vpack.c.bf16 %v153, %v152
  %v160 = vpack.c.bf16 %v155, %v154
  %v161 = vpack.c.bf16 %v157, %v156
  %v166 = vunpack.c.l.b16 %v158
  %v167 = vunpack.c.h.b16 %v158
  %v168 = vunpack.c.l.b16 %v159
  %v169 = vunpack.c.h.b16 %v159
  %v170 = vunpack.c.l.b16 %v160
  %v171 = vunpack.c.h.b16 %v160
  %v172 = vunpack.c.l.b16 %v161
  %v173 = vunpack.c.h.b16 %v161
  %v174 = vpack.c.b16 %v166, %v166
  %v175 = vpack.c.b16 %v167, %v167
  %v176 = vpack.c.b16 %v168, %v168
  %v177 = vpack.c.b16 %v169, %v169
  %v178 = vpack.c.b16 %v170, %v170
  %v179 = vpack.c.b16 %v171, %v171
  %v180 = vpack.c.b16 %v172, %v172
  %v181 = vpack.c.b16 %v173, %v173
  %vm190 = vcmask 125952
  %191 = vst.msk [vmem:[%s3] sm:$0xf] %vm190, %v174
  %192 = vst.msk [vmem:[%s3 + $0x4] sm:$0xf] %vm190, %v175
  %193 = vst.msk [vmem:[%s3 + $0x8] sm:$0xf] %vm190, %v176
  %194 = vst.msk [vmem:[%s3 + $0xc] sm:$0xf] %vm190, %v177
  %195 = vst.msk [vmem:[%s3 + $0x10] sm:$0xf] %vm190, %v178
  %196 = vst.msk [vmem:[%s3 + $0x14] sm:$0xf] %vm190, %v179
  %197 = vst.msk [vmem:[%s3 + $0x18] sm:$0xf] %vm190, %v180
  %198 = vst.msk [vmem:[%s3 + $0x1c] sm:$0xf] %vm190, %v181
  // Predicated region
  $region14: #{_forward_impl.3} parent=0 // pred_check
    _
  $region15: #{_forward_impl.3} parent=0 // pred_check_branch
    %200 = sbr.rel (0) target = $region17
  $region16: #{_forward_impl.3} parent=0 // pred_region
    _
  $region17: #{_forward_impl.3} parent=0 // pred_fallthru
    _
  // Predicated region
  $region18: #{_forward_impl.3} parent=0 // pred_check
    _
  $region19: #{_forward_impl.3} parent=0 // pred_check_branch
    %202 = sbr.rel (0) target = $region21
  $region20: #{_forward_impl.3} parent=0 // pred_region
    _
  $region21: #{_forward_impl.3} parent=0 // pred_fallthru
    _

// kernel: _forward_impl.5
$region0: #{_forward_impl.5}
  #allocation0 [shape = 'u32[]', space=smem, size = 0x4, offset = 0x4, fixed_abs, tag = 'smem constant byte address 0x4 - core index']
  #allocation1 [shape = 'u32[144,128]{1,0:T(1,128)}', space=vmem, size = 0x12000, scoped, tag = 'internal scratch']
  %s0 = inlined_call_operand.vmem [shape: f32[1,8,8], index: 0, kind: input, shape index: {}]
  %s1 = inlined_call_operand.vmem [shape: f32[16,8], index: 1, kind: input, shape index: {}]
  %s2 = inlined_call_operand.vmem [shape: f32[8,16], index: 2, kind: input, shape index: {}]
  %s3 = inlined_call_operand.hbm [shape: f32[1,16,16], index: 3, kind: output, shape index: {}]
  %s4 = sld [smem:[#allocation0]]
  $region22: #{_forward_impl.5} parent=0
    _
  %s6 = ssub.s32 1, %s4
  %s7 = scalar_select 0, %s6, %s4
  $region1: #{_forward_impl.5} parent=0
    #allocation2 [shape = 'u8[8192]{0}', space=vmem, size = 0x2000, scoped, tag = 'output window, operand 0, single buffered']
    #allocation3 [shape = 's32[1]{0}', space=sflag, size = 0x4, scoped, tag = 'scoped memory for _forward_impl.5']
    %8 = vsyncpa [#allocation3], 0
    // Predicated region
    $region2: #{_forward_impl.5} parent=1 // pred_check
      _
    $region3: #{_forward_impl.5} parent=1 // pred_check_branch
      %10 = sbr.rel (0) target = $region5
    $region4: #{_forward_impl.5} parent=1 // pred_region
      _
    $region5: #{_forward_impl.5} parent=1 // pred_fallthru
      _
    // Predicated region
    $region6: #{_forward_impl.5} parent=1 // pred_check
      _
    $region7: #{_forward_impl.5} parent=1 // pred_check_branch
      %12 = sbr.rel (0) target = $region9
    $region8: #{_forward_impl.5} parent=1 // pred_region
      _
    $region9: #{_forward_impl.5} parent=1 // pred_fallthru
      _
    // Predicated region
    $region10: #{_forward_impl.5} parent=1 // pred_check
      _
    $region11: #{_forward_impl.5} parent=1 // pred_check_branch
      %14 = sbr.rel (0) target = $region13
    $region12: #{_forward_impl.5} parent=1 // pred_region
      _
    $region13: #{_forward_impl.5} parent=1 // pred_fallthru
      _
    %v15 = vld [vmem:[%s1] sm:$0xff]
    %v16 = vld [vmem:[%s1 + $0x8] sm:$0xff]
    %v17 = vld [vmem:[%s0] sm:$0xff]
    %vm18 = vcmask 64512
    %v20 = vsel %vm18, %v15, 0
    %v23 = vsel %vm18, %v16, 0
    %25 = vmatprep.subr.mxu0 0.0
    %26 = vmatpush1.msra.mxu0 0.0
    %27 = vmatprep.subr.mxu0 0.0
    %28 = vmatpush1.msra.mxu0 0.0
    %29 = vmatprep.subr.mxu0 0.0
    %30 = vmatpush1.msra.mxu0 0.0
    %31 = vmatprep.subr.mxu0 0.0
    %32 = vmatpush1.msra.mxu0 0.0
    %33 = vmatprep.subr.mxu0 0.0
    %34 = vmatpush1.msra.mxu0 0.0
    %35 = vmatprep.subr.mxu0 0.0
    %36 = vmatpush1.msra.mxu0 0.0
    %37 = vmatprep.subr.mxu0 0.0
    %38 = vmatpush1.msra.mxu0 0.0
    %39 = vmatprep.subr.mxu0 0.0
    %40 = vmatpush1.msra.mxu0 0.0
    %41 = vmatprep.subr.mxu0 0.0
    %42 = vmatpush1.msra.mxu0 0.0
    %43 = vmatprep.subr.mxu0 0.0
    %44 = vmatpush1.msra.mxu0 0.0
    %45 = vmatprep.subr.mxu0 0.0
    %46 = vmatpush1.msra.mxu0 0.0
    %47 = vmatprep.subr.mxu0 0.0
    %48 = vmatpush1.msra.mxu0 0.0
    %49 = vmatprep.subr.mxu0 0.0
    %50 = vmatpush1.msra.mxu0 0.0
    %51 = vmatprep.subr.mxu0 0.0
    %52 = vmatpush1.msra.mxu0 0.0
    %53 = vmatprep.subr.mxu0 0.0
    %54 = vmatpush1.msra.mxu0 0.0
    %55 = vmatprep.subr.mxu0 0.0
    %56 = vmatpush1.msra.mxu0 %v17
    %57 = vmatprep.subr.mxu0 0.0
    %58 = vmatpush2.msra.mxu0 0.0
    %59 = vmatprep.subr.mxu0 0.0
    %60 = vmatpush2.msra.mxu0 0.0
    %61 = vmatprep.subr.mxu0 0.0
    %62 = vmatpush2.msra.mxu0 0.0
    %63 = vmatprep.subr.mxu0 0.0
    %64 = vmatpush2.msra.mxu0 0.0
    %65 = vmatprep.subr.mxu0 0.0
    %66 = vmatpush2.msra.mxu0 0.0
    %67 = vmatprep.subr.mxu0 0.0
    %68 = vmatpush2.msra.mxu0 0.0
    %69 = vmatprep.subr.mxu0 0.0
    %70 = vmatpush2.msra.mxu0 0.0
    %71 = vmatprep.subr.mxu0 0.0
    %72 = vmatpush2.msra.mxu0 0.0
    %73 = vmatprep.subr.mxu0 0.0
    %74 = vmatpush2.msra.mxu0 0.0
    %75 = vmatprep.subr.mxu0 0.0
    %76 = vmatpush2.msra.mxu0 0.0
    %77 = vmatprep.subr.mxu0 0.0
    %78 = vmatpush2.msra.mxu0 0.0
    %79 = vmatprep.subr.mxu0 0.0
    %80 = vmatpush2.msra.mxu0 0.0
    %81 = vmatprep.subr.mxu0 0.0
    %82 = vmatpush2.msra.mxu0 0.0
    %83 = vmatprep.subr.mxu0 0.0
    %84 = vmatpush2.msra.mxu0 0.0
    %85 = vmatprep.subr.mxu0 0.0
    %86 = vmatpush2.msra.mxu0 0.0
    %87 = vmatprep.subr.mxu0 0.0
    %88 = vmatpush2.msra.mxu0 0.0
    %89 = vmatprep.mubr.f32.mxu0 0.0
    %90 = vmatmul.mubr.f32.gmra.mxu0 %v20
    %v91 = vpop.f32.mrf.mxu0
    %v92 = vadd.f32 0.0, %v91
    %v93 = vpop.f32.mrf.mxu0
    %94 = vmatprep.mubr.f32.mxu0 0.0
    %95 = vmatmul.mubr.f32.gmra.mxu0 %v23
    %v96 = vpop.f32.mrf.mxu0
    %v97 = vadd.f32 0.0, %v96
    %v98 = vpop.f32.mrf.mxu0
    %99 = vdwg.mxu0
    %v100 = vld [vmem:[%s2] sm:$0xff]
    %v102 = vsel %vm18, %v92, 0
    %v105 = vsel %vm18, %v97, 0
    %107 = vmatprep.subr.mxu0 0.0
    %108 = vmatpush1.msra.mxu0 0.0
    %109 = vmatprep.subr.mxu0 0.0
    %110 = vmatpush1.msra.mxu0 0.0
    %111 = vmatprep.subr.mxu0 0.0
    %112 = vmatpush1.msra.mxu0 0.0
    %113 = vmatprep.subr.mxu0 0.0
    %114 = vmatpush1.msra.mxu0 0.0
    %115 = vmatprep.subr.mxu0 0.0
    %116 = vmatpush1.msra.mxu0 0.0
    %117 = vmatprep.subr.mxu0 0.0
    %118 = vmatpush1.msra.mxu0 0.0
    %119 = vmatprep.subr.mxu0 0.0
    %120 = vmatpush1.msra.mxu0 0.0
    %121 = vmatprep.subr.mxu0 0.0
    %122 = vmatpush1.msra.mxu0 0.0
    %123 = vmatprep.subr.mxu0 0.0
    %124 = vmatpush1.msra.mxu0 0.0
    %125 = vmatprep.subr.mxu0 0.0
    %126 = vmatpush1.msra.mxu0 0.0
    %127 = vmatprep.subr.mxu0 0.0
    %128 = vmatpush1.msra.mxu0 0.0
    %129 = vmatprep.subr.mxu0 0.0
    %130 = vmatpush1.msra.mxu0 0.0
    %131 = vmatprep.subr.mxu0 0.0
    %132 = vmatpush1.msra.mxu0 0.0
    %133 = vmatprep.subr.mxu0 0.0
    %134 = vmatpush1.msra.mxu0 0.0
    %135 = vmatprep.subr.mxu0 0.0
    %136 = vmatpush1.msra.mxu0 0.0
    %137 = vmatprep.subr.mxu0 0.0
    %138 = vmatpush1.msra.mxu0 %v100
    %139 = vmatprep.subr.mxu0 0.0
    %140 = vmatpush2.msra.mxu0 0.0
    %141 = vmatprep.subr.mxu0 0.0
    %142 = vmatpush2.msra.mxu0 0.0
    %143 = vmatprep.subr.mxu0 0.0
    %144 = vmatpush2.msra.mxu0 0.0
    %145 = vmatprep.subr.mxu0 0.0
    %146 = vmatpush2.msra.mxu0 0.0
    %147 = vmatprep.subr.mxu0 0.0
    %148 = vmatpush2.msra.mxu0 0.0
    %149 = vmatprep.subr.mxu0 0.0
    %150 = vmatpush2.msra.mxu0 0.0
    %151 = vmatprep.subr.mxu0 0.0
    %152 = vmatpush2.msra.mxu0 0.0
    %153 = vmatprep.subr.mxu0 0.0
    %154 = vmatpush2.msra.mxu0 0.0
    %155 = vmatprep.subr.mxu0 0.0
    %156 = vmatpush2.msra.mxu0 0.0
    %157 = vmatprep.subr.mxu0 0.0
    %158 = vmatpush2.msra.mxu0 0.0
    %159 = vmatprep.subr.mxu0 0.0
    %160 = vmatpush2.msra.mxu0 0.0
    %161 = vmatprep.subr.mxu0 0.0
    %162 = vmatpush2.msra.mxu0 0.0
    %163 = vmatprep.subr.mxu0 0.0
    %164 = vmatpush2.msra.mxu0 0.0
    %165 = vmatprep.subr.mxu0 0.0
    %166 = vmatpush2.msra.mxu0 0.0
    %167 = vmatprep.subr.mxu0 0.0
    %168 = vmatpush2.msra.mxu0 0.0
    %169 = vmatprep.subr.mxu0 0.0
    %170 = vmatpush2.msra.mxu0 0.0
    %171 = vmatprep.mubr.f32.mxu0 0.0
    %172 = vmatmul.mubr.f32.gmra.mxu0 %v102
    %v173 = vpop.f32.mrf.mxu0
    %v174 = vadd.f32 0.0, %v173
    %v175 = vpop.f32.mrf.mxu0
    %176 = vmatprep.mubr.f32.mxu0 0.0
    %177 = vmatmul.mubr.f32.gmra.mxu0 %v105
    %v178 = vpop.f32.mrf.mxu0
    %v179 = vadd.f32 0.0, %v178
    %v180 = vpop.f32.mrf.mxu0
    %181 = vdwg.mxu0
    %vm182 = vcmask 130048
    %183 = vst.msk [vmem:[#allocation2] sm:$0xff] %vm182, %v174
    %184 = vst.msk [vmem:[#allocation2 + $0x8] sm:$0xff] %vm182, %v179
    // Predicated region
    $region14: #{_forward_impl.5} parent=1 // pred_check
      _
    $region15: #{_forward_impl.5} parent=1 // pred_check_branch
      %186 = sbr.rel (0) target = $region17
    $region16: #{_forward_impl.5} parent=1 // pred_region
      %s188 = ssub.s32 256, 256
      %189 = vsyncadd [#allocation3], %s188
      %s190 = sshll.u32 [#allocation2], 4
      %s191 = int_to_ptr.vmem [resolvable:$true] %s190
      %196 = dma.vmem_to_hbm [thread:$0]  %s191, 256, %s3, [#allocation3], 128, 128, 8
    $region17: #{_forward_impl.5} parent=1 // pred_fallthru
      _
    // Predicated region
    $region18: #{_forward_impl.5} parent=1 // pred_check
      _
    $region19: #{_forward_impl.5} parent=1 // pred_check_branch
      %198 = sbr.rel (0) target = $region21
    $region20: #{_forward_impl.5} parent=1 // pred_region
      %199 = dma.done [#allocation3], 256
    $region21: #{_forward_impl.5} parent=1 // pred_fallthru
      _
    %200 = vsyncpa [#allocation3], 1

// kernel: _forward_impl.4
$region0: #{_forward_impl.4}
  #allocation0 [shape = 'u32[]', space=smem, size = 0x4, offset = 0x4, fixed_abs, tag = 'smem constant byte address 0x4 - core index']
  #allocation1 [shape = 'u32[144,128]{1,0:T(1,128)}', space=vmem, size = 0x12000, scoped, tag = 'internal scratch']
  #allocation2 [shape = 'f32[1,1]{1,0:T(1,128)S(1)}', space=vmem, size = 0x200, scoped, tag = 'scoped memory for _forward_impl.4']
  %s0 = inlined_call_operand.vmem [shape: bf16[1,10,10,16], index: 0, kind: input, shape index: {}]
  %s1 = inlined_call_operand.vmem [shape: bf16[144,16], index: 1, kind: input, shape index: {}]
  %s2 = inlined_call_operand.vmem [shape: f32[1,16], index: 2, kind: input, shape index: {}]
  %s3 = inlined_call_operand.vmem [shape: f32[1,1,16], index: 3, kind: input, shape index: {}]
  %s4 = inlined_call_operand.<no memory space> [shape: f32[1,1], index: 4, kind: input, shape index: {}]
  %s5 = inlined_call_operand.vmem [shape: f32[1,8,8], index: 5, kind: output, shape index: {}]
  %s6 = sld [smem:[#allocation0]]
  $region30: #{_forward_impl.4} parent=0
    _
  %s8 = ssub.s32 1, %s6
  %s9 = scalar_select 0, %s8, %s6
  %v10 = vstv %s4
  %11 = vst [vmem:[#allocation2] sm:$0x1] %v10
  // Predicated region
  $region2: #{_forward_impl.4} parent=0 // pred_check
    _
  $region3: #{_forward_impl.4} parent=0 // pred_check_branch
    %13 = sbr.rel (0) target = $region5
  $region4: #{_forward_impl.4} parent=0 // pred_region
    _
  $region5: #{_forward_impl.4} parent=0 // pred_fallthru
    _
  // Predicated region
  $region6: #{_forward_impl.4} parent=0 // pred_check
    _
  $region7: #{_forward_impl.4} parent=0 // pred_check_branch
    %15 = sbr.rel (0) target = $region9
  $region8: #{_forward_impl.4} parent=0 // pred_region
    _
  $region9: #{_forward_impl.4} parent=0 // pred_fallthru
    _
  // Predicated region
  $region10: #{_forward_impl.4} parent=0 // pred_check
    _
  $region11: #{_forward_impl.4} parent=0 // pred_check_branch
    %17 = sbr.rel (0) target = $region13
  $region12: #{_forward_impl.4} parent=0 // pred_region
    _
  $region13: #{_forward_impl.4} parent=0 // pred_fallthru
    _
  // Predicated region
  $region14: #{_forward_impl.4} parent=0 // pred_check
    _
  $region15: #{_forward_impl.4} parent=0 // pred_check_branch
    %19 = sbr.rel (0) target = $region17
  $region16: #{_forward_impl.4} parent=0 // pred_region
    _
  $region17: #{_forward_impl.4} parent=0 // pred_fallthru
    _
  // Predicated region
  $region18: #{_forward_impl.4} parent=0 // pred_check
    _
  $region19: #{_forward_impl.4} parent=0 // pred_check_branch
    %21 = sbr.rel (0) target = $region21
  $region20: #{_forward_impl.4} parent=0 // pred_region
    _
  $region21: #{_forward_impl.4} parent=0 // pred_fallthru
    _
  %s23 = smul.u32 0, 8
  %s24 = smul.u32 %s23, 2
  %s25 = smul.addr %s24, 4
  %s26 = scalar_lea.vmem %s0, %s25
  %v27 = vld [vmem:[%s26] sm:$0xf]
  %v28 = vld [vmem:[%s26 + $0x8] sm:$0xf]
  %v29 = vld [vmem:[%s26 + $0x10] sm:$0xf]
  %v30 = vld [vmem:[%s26 + $0x18] sm:$0xf]
  %v31 = vld [vmem:[%s26 + $0x20] sm:$0xf]
  %v32 = vld [vmem:[%s26 + $0x28] sm:$0xf]
  %v33 = vld [vmem:[%s26 + $0x30] sm:$0xf]
  %v34 = vld [vmem:[%s26 + $0x38] sm:$0xf]
  %v35 = vld [vmem:[%s1] sm:$0xf]
  %v36 = vld [vmem:[%s1 + $0x4] sm:$0xf]
  %v37 = vld [vmem:[%s26 + $0x4] sm:$0x1]
  %v38 = vld [vmem:[%s26 + $0xc] sm:$0x1]
  %v39 = vld [vmem:[%s26 + $0x14] sm:$0x1]
  %v40 = vld [vmem:[%s26 + $0x1c] sm:$0x1]
  %v41 = vld [vmem:[%s26 + $0x24] sm:$0x1]
  %v42 = vld [vmem:[%s26 + $0x2c] sm:$0x1]
  %v43 = vld [vmem:[%s26 + $0x34] sm:$0x1]
  %v44 = vld [vmem:[%s26 + $0x3c] sm:$0x1]
  %vm45 = vsmask.f32 3328
  %vm46 = vsmask.f32 7440
  %vm47 = vmor %vm45, %vm46
  %v49 = vshrl.u32 %v27, 16
  %v51 = vrot.slane %v49, 4
  %v52 = vshll.u32 %v27, 16
  %v54 = vrot.slane %v52, 5
  %v55 = vor.u32 %v51, %v54
  %v56 = vrot.slane %v55, 4
  %v58 = vshll.u32 %v37, 16
  %v60 = vrot.slane %v58, 5
  %v61 = vsel %vm47, %v56, %v60
  %v63 = vshrl.u32 %v28, 16
  %v65 = vrot.slane %v63, 4
  %v66 = vshll.u32 %v28, 16
  %v68 = vrot.slane %v66, 5
  %v69 = vor.u32 %v65, %v68
  %v70 = vrot.slane %v69, 4
  %v72 = vshll.u32 %v38, 16
  %v74 = vrot.slane %v72, 5
  %v75 = vsel %vm47, %v70, %v74
  %v77 = vshrl.u32 %v29, 16
  %v79 = vrot.slane %v77, 4
  %v80 = vshll.u32 %v29, 16
  %v82 = vrot.slane %v80, 5
  %v83 = vor.u32 %v79, %v82
  %v84 = vrot.slane %v83, 4
  %v86 = vshll.u32 %v39, 16
  %v88 = vrot.slane %v86, 5
  %v89 = vsel %vm47, %v84, %v88
  %v91 = vshrl.u32 %v30, 16
  %v93 = vrot.slane %v91, 4
  %v94 = vshll.u32 %v30, 16
  %v96 = vrot.slane %v94, 5
  %v97 = vor.u32 %v93, %v96
  %v98 = vrot.slane %v97, 4
  %v100 = vshll.u32 %v40, 16
  %v102 = vrot.slane %v100, 5
  %v103 = vsel %vm47, %v98, %v102
  %v105 = vshrl.u32 %v31, 16
  %v107 = vrot.slane %v105, 4
  %v108 = vshll.u32 %v31, 16
  %v110 = vrot.slane %v108, 5
  %v111 = vor.u32 %v107, %v110
  %v112 = vrot.slane %v111, 4
  %v114 = vshll.u32 %v41, 16
  %v116 = vrot.slane %v114, 5
  %v117 = vsel %vm47, %v112, %v116
  %v119 = vshrl.u32 %v32, 16
  %v121 = vrot.slane %v119, 4
  %v122 = vshll.u32 %v32, 16
  %v124 = vrot.slane %v122, 5
  %v125 = vor.u32 %v121, %v124
  %v126 = vrot.slane %v125, 4
  %v128 = vshll.u32 %v42, 16
  %v130 = vrot.slane %v128, 5
  %v131 = vsel %vm47, %v126, %v130
  %v133 = vshrl.u32 %v33, 16
  %v135 = vrot.slane %v133, 4
  %v136 = vshll.u32 %v33, 16
  %v138 = vrot.slane %v136, 5
  %v139 = vor.u32 %v135, %v138
  %v140 = vrot.slane %v139, 4
  %v142 = vshll.u32 %v43, 16
  %v144 = vrot.slane %v142, 5
  %v145 = vsel %vm47, %v140, %v144
  %v147 = vshrl.u32 %v34, 16
  %v149 = vrot.slane %v147, 4
  %v150 = vshll.u32 %v34, 16
  %v152 = vrot.slane %v150, 5
  %v153 = vor.u32 %v149, %v152
  %v154 = vrot.slane %v153, 4
  %v156 = vshll.u32 %v44, 16
  %v158 = vrot.slane %v156, 5
  %v159 = vsel %vm47, %v154, %v158
  %v160 = vld [vmem:[%s1 + $0x8] sm:$0xf]
  %v161 = vld [vmem:[%s1 + $0xc] sm:$0xf]
  %v162 = vunpack.c.l.b16 %v61
  %v163 = vunpack.c.l.b16 %v75
  %v164 = vunpack.c.l.b16 %v89
  %v165 = vunpack.c.l.b16 %v103
  %v166 = vunpack.c.l.b16 %v117
  %v167 = vunpack.c.l.b16 %v131
  %v168 = vunpack.c.l.b16 %v145
  %v169 = vunpack.c.l.b16 %v159
  %v170 = vpack.c.b16 %v163, %v162
  %v171 = vpack.c.b16 %v165, %v164
  %v172 = vpack.c.b16 %v167, %v166
  %v173 = vpack.c.b16 %v169, %v168
  %v176 = vunpack.c.l.b16 %v160
  %v177 = vunpack.c.l.b16 %v161
  %v178 = vpack.c.b16 %v177, %v176
  %vm180 = vcmask 130048
  %v182 = vsel %vm180, %v170, 0
  %v185 = vsel %vm180, %v171, 0
  %v188 = vsel %vm180, %v172, 0
  %v191 = vsel %vm180, %v173, 0
  %193 = vmatprep.subr.bf16.mxu0 0
  %194 = vmatpush1.bf16.msra.mxu0 0
  %195 = vmatprep.subr.bf16.mxu0 0
  %196 = vmatpush1.bf16.msra.mxu0 0
  %197 = vmatprep.subr.bf16.mxu0 0
  %198 = vmatpush1.bf16.msra.mxu0 0
  %199 = vmatprep.subr.bf16.mxu0 0
  %200 = vmatpush1.bf16.msra.mxu0 0
  %201 = vmatprep.subr.bf16.mxu0 0
  %202 = vmatpush1.bf16.msra.mxu0 0
  %203 = vmatprep.subr.bf16.mxu0 0
  %204 = vmatpush1.bf16.msra.mxu0 0
  %205 = vmatprep.subr.bf16.mxu0 0
  %206 = vmatpush1.bf16.msra.mxu0 0
  %207 = vmatprep.subr.bf16.mxu0 0
  %208 = vmatpush1.bf16.msra.mxu0 %v178
  %209 = vmatprep.subr.bf16.mxu0 0
  %210 = vmatpush2.bf16.msra.mxu0 0
  %211 = vmatprep.subr.bf16.mxu0 0
  %212 = vmatpush2.bf16.msra.mxu0 0
  %213 = vmatprep.subr.bf16.mxu0 0
  %214 = vmatpush2.bf16.msra.mxu0 0
  %215 = vmatprep.subr.bf16.mxu0 0
  %216 = vmatpush2.bf16.msra.mxu0 0
  %217 = vmatprep.subr.bf16.mxu0 0
  %218 = vmatpush2.bf16.msra.mxu0 0
  %219 = vmatprep.subr.bf16.mxu0 0
  %220 = vmatpush2.bf16.msra.mxu0 0
  %221 = vmatprep.subr.bf16.mxu0 0
  %222 = vmatpush2.bf16.msra.mxu0 0
  %223 = vmatprep.subr.bf16.mxu0 0
  %224 = vmatpush2.bf16.msra.mxu0 0
  %225 = vmatprep.mubr.bf16.mxu0 0
  %226 = vmatmul.mubr.bf16.gmra.mxu0 %v182
  %v227 = vpop.f32.mrf.mxu0
  %v228 = vadd.f32 0.0, %v227
  %v229 = vpop.f32.mrf.mxu0
  %v230 = vpop.f32.mrf.mxu0
  %v231 = vadd.f32 0.0, %v230
  %v232 = vpop.f32.mrf.mxu0
  %233 = vmatprep.mubr.bf16.mxu0 0
  %234 = vmatmul.mubr.bf16.gmra.mxu0 %v185
  %v235 = vpop.f32.mrf.mxu0
  %v236 = vadd.f32 0.0, %v235
  %v237 = vpop.f32.mrf.mxu0
  %v238 = vpop.f32.mrf.mxu0
  %v239 = vadd.f32 0.0, %v238
  %v240 = vpop.f32.mrf.mxu0
  %241 = vmatprep.mubr.bf16.mxu0 0
  %242 = vmatmul.mubr.bf16.gmra.mxu0 %v188
  %v243 = vpop.f32.mrf.mxu0
  %v244 = vadd.f32 0.0, %v243
  %v245 = vpop.f32.mrf.mxu0
  %v246 = vpop.f32.mrf.mxu0
  %v247 = vadd.f32 0.0, %v246
  %v248 = vpop.f32.mrf.mxu0
  %249 = vmatprep.mubr.bf16.mxu0 0
  %250 = vmatmul.mubr.bf16.gmra.mxu0 %v191
  %v251 = vpop.f32.mrf.mxu0
  %v252 = vadd.f32 0.0, %v251
  %v253 = vpop.f32.mrf.mxu0
  %v254 = vpop.f32.mrf.mxu0
  %v255 = vadd.f32 0.0, %v254
  %v256 = vpop.f32.mrf.mxu0
  %257 = vdwg.mxu0
  %v266 = vunpack.c.l.b16 %v27
  %v267 = vunpack.c.l.b16 %v28
  %v268 = vunpack.c.l.b16 %v29
  %v269 = vunpack.c.l.b16 %v30
  %v270 = vunpack.c.l.b16 %v31
  %v271 = vunpack.c.l.b16 %v32
  %v272 = vunpack.c.l.b16 %v33
  %v273 = vunpack.c.l.b16 %v34
  %v274 = vpack.c.b16 %v267, %v266
  %v275 = vpack.c.b16 %v269, %v268
  %v276 = vpack.c.b16 %v271, %v270
  %v277 = vpack.c.b16 %v273, %v272
  %v280 = vunpack.c.l.b16 %v35
  %v281 = vunpack.c.l.b16 %v36
  %v282 = vpack.c.b16 %v281, %v280
  %v285 = vsel %vm180, %v274, 0
  %v288 = vsel %vm180, %v275, 0
  %v291 = vsel %vm180, %v276, 0
  %v294 = vsel %vm180, %v277, 0
  %296 = vmatprep.subr.bf16.mxu0 0
  %297 = vmatpush1.bf16.msra.mxu0 0
  %298 = vmatprep.subr.bf16.mxu0 0
  %299 = vmatpush1.bf16.msra.mxu0 0
  %300 = vmatprep.subr.bf16.mxu0 0
  %301 = vmatpush1.bf16.msra.mxu0 0
  %302 = vmatprep.subr.bf16.mxu0 0
  %303 = vmatpush1.bf16.msra.mxu0 0
  %304 = vmatprep.subr.bf16.mxu0 0
  %305 = vmatpush1.bf16.msra.mxu0 0
  %306 = vmatprep.subr.bf16.mxu0 0
  %307 = vmatpush1.bf16.msra.mxu0 0
  %308 = vmatprep.subr.bf16.mxu0 0
  %309 = vmatpush1.bf16.msra.mxu0 0
  %310 = vmatprep.subr.bf16.mxu0 0
  %311 = vmatpush1.bf16.msra.mxu0 %v282
  %312 = vmatprep.subr.bf16.mxu0 0
  %313 = vmatpush2.bf16.msra.mxu0 0
  %314 = vmatprep.subr.bf16.mxu0 0
  %315 = vmatpush2.bf16.msra.mxu0 0
  %316 = vmatprep.subr.bf16.mxu0 0
  %317 = vmatpush2.bf16.msra.mxu0 0
  %318 = vmatprep.subr.bf16.mxu0 0
  %319 = vmatpush2.bf16.msra.mxu0 0
  %320 = vmatprep.subr.bf16.mxu0 0
  %321 = vmatpush2.bf16.msra.mxu0 0
  %322 = vmatprep.subr.bf16.mxu0 0
  %323 = vmatpush2.bf16.msra.mxu0 0
  %324 = vmatprep.subr.bf16.mxu0 0
  %325 = vmatpush2.bf16.msra.mxu0 0
  %326 = vmatprep.subr.bf16.mxu0 0
  %327 = vmatpush2.bf16.msra.mxu0 0
  %328 = vmatprep.mubr.bf16.mxu0 0
  %329 = vmatmul.mubr.bf16.gmra.mxu0 %v285
  %v330 = vpop.f32.mrf.mxu0
  %v331 = vadd.f32 %v228, %v330
  %v332 = vpop.f32.mrf.mxu0
  %v333 = vpop.f32.mrf.mxu0
  %v334 = vadd.f32 %v231, %v333
  %v335 = vpop.f32.mrf.mxu0
  %336 = vmatprep.mubr.bf16.mxu0 0
  %337 = vmatmul.mubr.bf16.gmra.mxu0 %v288
  %v338 = vpop.f32.mrf.mxu0
  %v339 = vadd.f32 %v236, %v338
  %v340 = vpop.f32.mrf.mxu0
  %v341 = vpop.f32.mrf.mxu0
  %v342 = vadd.f32 %v239, %v341
  %v343 = vpop.f32.mrf.mxu0
  %344 = vmatprep.mubr.bf16.mxu0 0
  %345 = vmatmul.mubr.bf16.gmra.mxu0 %v291
  %v346 = vpop.f32.mrf.mxu0
  %v347 = vadd.f32 %v244, %v346
  %v348 = vpop.f32.mrf.mxu0
  %v349 = vpop.f32.mrf.mxu0
  %v350 = vadd.f32 %v247, %v349
  %v351 = vpop.f32.mrf.mxu0
  %352 = vmatprep.mubr.bf16.mxu0 0
  %353 = vmatmul.mubr.bf16.gmra.mxu0 %v294
  %v354 = vpop.f32.mrf.mxu0
  %v355 = vadd.f32 %v252, %v354
  %v356 = vpop.f32.mrf.mxu0
  %v357 = vpop.f32.mrf.mxu0
  %v358 = vadd.f32 %v255, %v357
  %v359 = vpop.f32.mrf.mxu0
  %360 = vdwg.mxu0
  %v361 = vld [vmem:[%s26] sm:$0xe]
  %v362 = vld [vmem:[%s26 + $0x8] sm:$0xe]
  %v363 = vld [vmem:[%s26 + $0x10] sm:$0xe]
  %v364 = vld [vmem:[%s26 + $0x18] sm:$0xe]
  %v365 = vld [vmem:[%s26 + $0x20] sm:$0xe]
  %v366 = vld [vmem:[%s26 + $0x28] sm:$0xe]
  %v367 = vld [vmem:[%s26 + $0x30] sm:$0xe]
  %v368 = vld [vmem:[%s26 + $0x38] sm:$0xe]
  %vm385 = vcmask 1042432
  %vm386 = vcmask 1046532
  %vm387 = vmor %vm385, %vm386
  %v388 = vrot.slane %v361, 5
  %v389 = vrot.slane %v388, 4
  %v390 = vrot.slane %v37, 5
  %v391 = vsel %vm387, %v389, %v390
  %v392 = vrot.slane %v362, 5
  %v393 = vrot.slane %v392, 4
  %v394 = vrot.slane %v38, 5
  %v395 = vsel %vm387, %v393, %v394
  %v396 = vrot.slane %v363, 5
  %v397 = vrot.slane %v396, 4
  %v398 = vrot.slane %v39, 5
  %v399 = vsel %vm387, %v397, %v398
  %v400 = vrot.slane %v364, 5
  %v401 = vrot.slane %v400, 4
  %v402 = vrot.slane %v40, 5
  %v403 = vsel %vm387, %v401, %v402
  %v404 = vrot.slane %v365, 5
  %v405 = vrot.slane %v404, 4
  %v406 = vrot.slane %v41, 5
  %v407 = vsel %vm387, %v405, %v406
  %v408 = vrot.slane %v366, 5
  %v409 = vrot.slane %v408, 4
  %v410 = vrot.slane %v42, 5
  %v411 = vsel %vm387, %v409, %v410
  %v412 = vrot.slane %v367, 5
  %v413 = vrot.slane %v412, 4
  %v414 = vrot.slane %v43, 5
  %v415 = vsel %vm387, %v413, %v414
  %v416 = vrot.slane %v368, 5
  %v417 = vrot.slane %v416, 4
  %v418 = vrot.slane %v44, 5
  %v419 = vsel %vm387, %v417, %v418
  %v420 = vld [vmem:[%s1 + $0x10] sm:$0xf]
  %v421 = vld [vmem:[%s1 + $0x14] sm:$0xf]
  %v422 = vunpack.c.l.b16 %v391
  %v423 = vunpack.c.l.b16 %v395
  %v424 = vunpack.c.l.b16 %v399
  %v425 = vunpack.c.l.b16 %v403
  %v426 = vunpack.c.l.b16 %v407
  %v427 = vunpack.c.l.b16 %v411
  %v428 = vunpack.c.l.b16 %v415
  %v429 = vunpack.c.l.b16 %v419
  %v430 = vpack.c.b16 %v423, %v422
  %v431 = vpack.c.b16 %v425, %v424
  %v432 = vpack.c.b16 %v427, %v426
  %v433 = vpack.c.b16 %v429, %v428
  %v436 = vunpack.c.l.b16 %v420
  %v437 = vunpack.c.l.b16 %v421
  %v438 = vpack.c.b16 %v437, %v436
  %v441 = vsel %vm180, %v430, 0
  %v444 = vsel %vm180, %v431, 0
  %v447 = vsel %vm180, %v432, 0
  %v450 = vsel %vm180, %v433, 0
  %452 = vmatprep.subr.bf16.mxu0 0
  %453 = vmatpush1.bf16.msra.mxu0 0
  %454 = vmatprep.subr.bf16.mxu0 0
  %455 = vmatpush1.bf16.msra.mxu0 0
  %456 = vmatprep.subr.bf16.mxu0 0
  %457 = vmatpush1.bf16.msra.mxu0 0
  %458 = vmatprep.subr.bf16.mxu0 0
  %459 = vmatpush1.bf16.msra.mxu0 0
  %460 = vmatprep.subr.bf16.mxu0 0
  %461 = vmatpush1.bf16.msra.mxu0 0
  %462 = vmatprep.subr.bf16.mxu0 0
  %463 = vmatpush1.bf16.msra.mxu0 0
  %464 = vmatprep.subr.bf16.mxu0 0
  %465 = vmatpush1.bf16.msra.mxu0 0
  %466 = vmatprep.subr.bf16.mxu0 0
  %467 = vmatpush1.bf16.msra.mxu0 %v438
  %468 = vmatprep.subr.bf16.mxu0 0
  %469 = vmatpush2.bf16.msra.mxu0 0
  %470 = vmatprep.subr.bf16.mxu0 0
  %471 = vmatpush2.bf16.msra.mxu0 0
  %472 = vmatprep.subr.bf16.mxu0 0
  %473 = vmatpush2.bf16.msra.mxu0 0
  %474 = vmatprep.subr.bf16.mxu0 0
  %475 = vmatpush2.bf16.msra.mxu0 0
  %476 = vmatprep.subr.bf16.mxu0 0
  %477 = vmatpush2.bf16.msra.mxu0 0
  %478 = vmatprep.subr.bf16.mxu0 0
  %479 = vmatpush2.bf16.msra.mxu0 0
  %480 = vmatprep.subr.bf16.mxu0 0
  %481 = vmatpush2.bf16.msra.mxu0 0
  %482 = vmatprep.subr.bf16.mxu0 0
  %483 = vmatpush2.bf16.msra.mxu0 0
  %484 = vmatprep.mubr.bf16.mxu0 0
  %485 = vmatmul.mubr.bf16.gmra.mxu0 %v441
  %v486 = vpop.f32.mrf.mxu0
  %v487 = vadd.f32 0.0, %v486
  %v488 = vpop.f32.mrf.mxu0
  %v489 = vpop.f32.mrf.mxu0
  %v490 = vadd.f32 0.0, %v489
  %v491 = vpop.f32.mrf.mxu0
  %492 = vmatprep.mubr.bf16.mxu0 0
  %493 = vmatmul.mubr.bf16.gmra.mxu0 %v444
  %v494 = vpop.f32.mrf.mxu0
  %v495 = vadd.f32 0.0, %v494
  %v496 = vpop.f32.mrf.mxu0
  %v497 = vpop.f32.mrf.mxu0
  %v498 = vadd.f32 0.0, %v497
  %v499 = vpop.f32.mrf.mxu0
  %500 = vmatprep.mubr.bf16.mxu0 0
  %501 = vmatmul.mubr.bf16.gmra.mxu0 %v447
  %v502 = vpop.f32.mrf.mxu0
  %v503 = vadd.f32 0.0, %v502
  %v504 = vpop.f32.mrf.mxu0
  %v505 = vpop.f32.mrf.mxu0
  %v506 = vadd.f32 0.0, %v505
  %v507 = vpop.f32.mrf.mxu0
  %508 = vmatprep.mubr.bf16.mxu0 0
  %509 = vmatmul.mubr.bf16.gmra.mxu0 %v450
  %v510 = vpop.f32.mrf.mxu0
  %v511 = vadd.f32 0.0, %v510
  %v512 = vpop.f32.mrf.mxu0
  %v513 = vpop.f32.mrf.mxu0
  %v514 = vadd.f32 0.0, %v513
  %v515 = vpop.f32.mrf.mxu0
  %516 = vdwg.mxu0
  %v517 = vadd.f32 %v331, %v487
  %v518 = vadd.f32 %v334, %v490
  %v519 = vadd.f32 %v339, %v495
  %v520 = vadd.f32 %v342, %v498
  %v521 = vadd.f32 %v347, %v503
  %v522 = vadd.f32 %v350, %v506
  %v523 = vadd.f32 %v355, %v511
  %v524 = vadd.f32 %v358, %v514
  %s525 = sadd.s32 %s23, 1
  %s526 = smul.u32 %s525, 2
  %s527 = smul.addr %s526, 4
  %s528 = scalar_lea.vmem %s0, %s527
  %v529 = vld [vmem:[%s528] sm:$0xf]
  %v530 = vld [vmem:[%s528 + $0x8] sm:$0xf]
  %v531 = vld [vmem:[%s528 + $0x10] sm:$0xf]
  %v532 = vld [vmem:[%s528 + $0x18] sm:$0xf]
  %v533 = vld [vmem:[%s528 + $0x20] sm:$0xf]
  %v534 = vld [vmem:[%s528 + $0x28] sm:$0xf]
  %v535 = vld [vmem:[%s528 + $0x30] sm:$0xf]
  %v536 = vld [vmem:[%s528 + $0x38] sm:$0xf]
  %v537 = vld [vmem:[%s1 + $0x18] sm:$0xf]
  %v538 = vld [vmem:[%s1 + $0x1c] sm:$0xf]
  %v547 = vunpack.c.l.b16 %v529
  %v548 = vunpack.c.l.b16 %v530
  %v549 = vunpack.c.l.b16 %v531
  %v550 = vunpack.c.l.b16 %v532
  %v551 = vunpack.c.l.b16 %v533
  %v552 = vunpack.c.l.b16 %v534
  %v553 = vunpack.c.l.b16 %v535
  %v554 = vunpack.c.l.b16 %v536
  %v555 = vpack.c.b16 %v548, %v547
  %v556 = vpack.c.b16 %v550, %v549
  %v557 = vpack.c.b16 %v552, %v551
  %v558 = vpack.c.b16 %v554, %v553
  %v561 = vunpack.c.l.b16 %v537
  %v562 = vunpack.c.l.b16 %v538
  %v563 = vpack.c.b16 %v562, %v561
  %v566 = vsel %vm180, %v555, 0
  %v569 = vsel %vm180, %v556, 0
  %v572 = vsel %vm180, %v557, 0
  %v575 = vsel %vm180, %v558, 0
  %577 = vmatprep.subr.bf16.mxu0 0
  %578 = vmatpush1.bf16.msra.mxu0 0
  %579 = vmatprep.subr.bf16.mxu0 0
  %580 = vmatpush1.bf16.msra.mxu0 0
  %581 = vmatprep.subr.bf16.mxu0 0
  %582 = vmatpush1.bf16.msra.mxu0 0
  %583 = vmatprep.subr.bf16.mxu0 0
  %584 = vmatpush1.bf16.msra.mxu0 0
  %585 = vmatprep.subr.bf16.mxu0 0
  %586 = vmatpush1.bf16.msra.mxu0 0
  %587 = vmatprep.subr.bf16.mxu0 0
  %588 = vmatpush1.bf16.msra.mxu0 0
  %589 = vmatprep.subr.bf16.mxu0 0
  %590 = vmatpush1.bf16.msra.mxu0 0
  %591 = vmatprep.subr.bf16.mxu0 0
  %592 = vmatpush1.bf16.msra.mxu0 %v563
  %593 = vmatprep.subr.bf16.mxu0 0
  %594 = vmatpush2.bf16.msra.mxu0 0
  %595 = vmatprep.subr.bf16.mxu0 0
  %596 = vmatpush2.bf16.msra.mxu0 0
  %597 = vmatprep.subr.bf16.mxu0 0
  %598 = vmatpush2.bf16.msra.mxu0 0
  %599 = vmatprep.subr.bf16.mxu0 0
  %600 = vmatpush2.bf16.msra.mxu0 0
  %601 = vmatprep.subr.bf16.mxu0 0
  %602 = vmatpush2.bf16.msra.mxu0 0
  %603 = vmatprep.subr.bf16.mxu0 0
  %604 = vmatpush2.bf16.msra.mxu0 0
  %605 = vmatprep.subr.bf16.mxu0 0
  %606 = vmatpush2.bf16.msra.mxu0 0
  %607 = vmatprep.subr.bf16.mxu0 0
  %608 = vmatpush2.bf16.msra.mxu0 0
  %609 = vmatprep.mubr.bf16.mxu0 0
  %610 = vmatmul.mubr.bf16.gmra.mxu0 %v566
  %v611 = vpop.f32.mrf.mxu0
  %v612 = vadd.f32 0.0, %v611
  %v613 = vpop.f32.mrf.mxu0
  %v614 = vpop.f32.mrf.mxu0
  %v615 = vadd.f32 0.0, %v614
  %v616 = vpop.f32.mrf.mxu0
  %617 = vmatprep.mubr.bf16.mxu0 0
  %618 = vmatmul.mubr.bf16.gmra.mxu0 %v569
  %v619 = vpop.f32.mrf.mxu0
  %v620 = vadd.f32 0.0, %v619
  %v621 = vpop.f32.mrf.mxu0
  %v622 = vpop.f32.mrf.mxu0
  %v623 = vadd.f32 0.0, %v622
  %v624 = vpop.f32.mrf.mxu0
  %625 = vmatprep.mubr.bf16.mxu0 0
  %626 = vmatmul.mubr.bf16.gmra.mxu0 %v572
  %v627 = vpop.f32.mrf.mxu0
  %v628 = vadd.f32 0.0, %v627
  %v629 = vpop.f32.mrf.mxu0
  %v630 = vpop.f32.mrf.mxu0
  %v631 = vadd.f32 0.0, %v630
  %v632 = vpop.f32.mrf.mxu0
  %633 = vmatprep.mubr.bf16.mxu0 0
  %634 = vmatmul.mubr.bf16.gmra.mxu0 %v575
  %v635 = vpop.f32.mrf.mxu0
  %v636 = vadd.f32 0.0, %v635
  %v637 = vpop.f32.mrf.mxu0
  %v638 = vpop.f32.mrf.mxu0
  %v639 = vadd.f32 0.0, %v638
  %v640 = vpop.f32.mrf.mxu0
  %641 = vdwg.mxu0
  %v642 = vadd.f32 %v517, %v612
  %v643 = vadd.f32 %v518, %v615
  %v644 = vadd.f32 %v519, %v620
  %v645 = vadd.f32 %v520, %v623
  %v646 = vadd.f32 %v521, %v628
  %v647 = vadd.f32 %v522, %v631
  %v648 = vadd.f32 %v523, %v636
  %v649 = vadd.f32 %v524, %v639
  %v650 = vld [vmem:[%s528] sm:$0xf]
  %v651 = vld [vmem:[%s528 + $0x4] sm:$0x1]
  %v652 = vld [vmem:[%s528 + $0x8] sm:$0xf]
  %v653 = vld [vmem:[%s528 + $0xc] sm:$0x1]
  %v654 = vld [vmem:[%s528 + $0x10] sm:$0xf]
  %v655 = vld [vmem:[%s528 + $0x14] sm:$0x1]
  %v656 = vld [vmem:[%s528 + $0x18] sm:$0xf]
  %v657 = vld [vmem:[%s528 + $0x1c] sm:$0x1]
  %v658 = vld [vmem:[%s528 + $0x20] sm:$0xf]
  %v659 = vld [vmem:[%s528 + $0x24] sm:$0x1]
  %v660 = vld [vmem:[%s528 + $0x28] sm:$0xf]
  %v661 = vld [vmem:[%s528 + $0x2c] sm:$0x1]
  %v662 = vld [vmem:[%s528 + $0x30] sm:$0xf]
  %v663 = vld [vmem:[%s528 + $0x34] sm:$0x1]
  %v664 = vld [vmem:[%s528 + $0x38] sm:$0xf]
  %v665 = vld [vmem:[%s528 + $0x3c] sm:$0x1]
  %v667 = vshrl.u32 %v650, 16
  %v669 = vrot.slane %v667, 4
  %v670 = vshll.u32 %v650, 16
  %v672 = vrot.slane %v670, 5
  %v673 = vor.u32 %v669, %v672
  %v674 = vrot.slane %v673, 4
  %v676 = vshll.u32 %v651, 16
  %v678 = vrot.slane %v676, 5
  %v679 = vsel %vm47, %v674, %v678
  %v681 = vshrl.u32 %v652, 16
  %v683 = vrot.slane %v681, 4
  %v684 = vshll.u32 %v652, 16
  %v686 = vrot.slane %v684, 5
  %v687 = vor.u32 %v683, %v686
  %v688 = vrot.slane %v687, 4
  %v690 = vshll.u32 %v653, 16
  %v692 = vrot.slane %v690, 5
  %v693 = vsel %vm47, %v688, %v692
  %v695 = vshrl.u32 %v654, 16
  %v697 = vrot.slane %v695, 4
  %v698 = vshll.u32 %v654, 16
  %v700 = vrot.slane %v698, 5
  %v701 = vor.u32 %v697, %v700
  %v702 = vrot.slane %v701, 4
  %v704 = vshll.u32 %v655, 16
  %v706 = vrot.slane %v704, 5
  %v707 = vsel %vm47, %v702, %v706
  %v709 = vshrl.u32 %v656, 16
  %v711 = vrot.slane %v709, 4
  %v712 = vshll.u32 %v656, 16
  %v714 = vrot.slane %v712, 5
  %v715 = vor.u32 %v711, %v714
  %v716 = vrot.slane %v715, 4
  %v718 = vshll.u32 %v657, 16
  %v720 = vrot.slane %v718, 5
  %v721 = vsel %vm47, %v716, %v720
  %v723 = vshrl.u32 %v658, 16
  %v725 = vrot.slane %v723, 4
  %v726 = vshll.u32 %v658, 16
  %v728 = vrot.slane %v726, 5
  %v729 = vor.u32 %v725, %v728
  %v730 = vrot.slane %v729, 4
  %v732 = vshll.u32 %v659, 16
  %v734 = vrot.slane %v732, 5
  %v735 = vsel %vm47, %v730, %v734
  %v737 = vshrl.u32 %v660, 16
  %v739 = vrot.slane %v737, 4
  %v740 = vshll.u32 %v660, 16
  %v742 = vrot.slane %v740, 5
  %v743 = vor.u32 %v739, %v742
  %v744 = vrot.slane %v743, 4
  %v746 = vshll.u32 %v661, 16
  %v748 = vrot.slane %v746, 5
  %v749 = vsel %vm47, %v744, %v748
  %v751 = vshrl.u32 %v662, 16
  %v753 = vrot.slane %v751, 4
  %v754 = vshll.u32 %v662, 16
  %v756 = vrot.slane %v754, 5
  %v757 = vor.u32 %v753, %v756
  %v758 = vrot.slane %v757, 4
  %v760 = vshll.u32 %v663, 16
  %v762 = vrot.slane %v760, 5
  %v763 = vsel %vm47, %v758, %v762
  %v765 = vshrl.u32 %v664, 16
  %v767 = vrot.slane %v765, 4
  %v768 = vshll.u32 %v664, 16
  %v770 = vrot.slane %v768, 5
  %v771 = vor.u32 %v767, %v770
  %v772 = vrot.slane %v771, 4
  %v774 = vshll.u32 %v665, 16
  %v776 = vrot.slane %v774, 5
  %v777 = vsel %vm47, %v772, %v776
  %v778 = vld [vmem:[%s1 + $0x20] sm:$0xf]
  %v779 = vld [vmem:[%s1 + $0x24] sm:$0xf]
  %v780 = vunpack.c.l.b16 %v679
  %v781 = vunpack.c.l.b16 %v693
  %v782 = vunpack.c.l.b16 %v707
  %v783 = vunpack.c.l.b16 %v721
  %v784 = vunpack.c.l.b16 %v735
  %v785 = vunpack.c.l.b16 %v749
  %v786 = vunpack.c.l.b16 %v763
  %v787 = vunpack.c.l.b16 %v777
  %v788 = vpack.c.b16 %v781, %v780
  %v789 = vpack.c.b16 %v783, %v782
  %v790 = vpack.c.b16 %v785, %v784
  %v791 = vpack.c.b16 %v787, %v786
  %v794 = vunpack.c.l.b16 %v778
  %v795 = vunpack.c.l.b16 %v779
  %v796 = vpack.c.b16 %v795, %v794
  %v799 = vsel %vm180, %v788, 0
  %v802 = vsel %vm180, %v789, 0
  %v805 = vsel %vm180, %v790, 0
  %v808 = vsel %vm180, %v791, 0
  %810 = vmatprep.subr.bf16.mxu0 0
  %811 = vmatpush1.bf16.msra.mxu0 0
  %812 = vmatprep.subr.bf16.mxu0 0
  %813 = vmatpush1.bf16.msra.mxu0 0
  %814 = vmatprep.subr.bf16.mxu0 0
  %815 = vmatpush1.bf16.msra.mxu0 0
  %816 = vmatprep.subr.bf16.mxu0 0
  %817 = vmatpush1.bf16.msra.mxu0 0
  %818 = vmatprep.subr.bf16.mxu0 0
  %819 = vmatpush1.bf16.msra.mxu0 0
  %820 = vmatprep.subr.bf16.mxu0 0
  %821 = vmatpush1.bf16.msra.mxu0 0
  %822 = vmatprep.subr.bf16.mxu0 0
  %823 = vmatpush1.bf16.msra.mxu0 0
  %824 = vmatprep.subr.bf16.mxu0 0
  %825 = vmatpush1.bf16.msra.mxu0 %v796
  %826 = vmatprep.subr.bf16.mxu0 0
  %827 = vmatpush2.bf16.msra.mxu0 0
  %828 = vmatprep.subr.bf16.mxu0 0
  %829 = vmatpush2.bf16.msra.mxu0 0
  %830 = vmatprep.subr.bf16.mxu0 0
  %831 = vmatpush2.bf16.msra.mxu0 0
  %832 = vmatprep.subr.bf16.mxu0 0
  %833 = vmatpush2.bf16.msra.mxu0 0
  %834 = vmatprep.subr.bf16.mxu0 0
  %835 = vmatpush2.bf16.msra.mxu0 0
  %836 = vmatprep.subr.bf16.mxu0 0
  %837 = vmatpush2.bf16.msra.mxu0 0
  %838 = vmatprep.subr.bf16.mxu0 0
  %839 = vmatpush2.bf16.msra.mxu0 0
  %840 = vmatprep.subr.bf16.mxu0 0
  %841 = vmatpush2.bf16.msra.mxu0 0
  %842 = vmatprep.mubr.bf16.mxu0 0
  %843 = vmatmul.mubr.bf16.gmra.mxu0 %v799
  %v844 = vpop.f32.mrf.mxu0
  %v845 = vadd.f32 0.0, %v844
  %v846 = vpop.f32.mrf.mxu0
  %v847 = vpop.f32.mrf.mxu0
  %v848 = vadd.f32 0.0, %v847
  %v849 = vpop.f32.mrf.mxu0
  %850 = vmatprep.mubr.bf16.mxu0 0
  %851 = vmatmul.mubr.bf16.gmra.mxu0 %v802
  %v852 = vpop.f32.mrf.mxu0
  %v853 = vadd.f32 0.0, %v852
  %v854 = vpop.f32.mrf.mxu0
  %v855 = vpop.f32.mrf.mxu0
  %v856 = vadd.f32 0.0, %v855
  %v857 = vpop.f32.mrf.mxu0
  %858 = vmatprep.mubr.bf16.mxu0 0
  %859 = vmatmul.mubr.bf16.gmra.mxu0 %v805
  %v860 = vpop.f32.mrf.mxu0
  %v861 = vadd.f32 0.0, %v860
  %v862 = vpop.f32.mrf.mxu0
  %v863 = vpop.f32.mrf.mxu0
  %v864 = vadd.f32 0.0, %v863
  %v865 = vpop.f32.mrf.mxu0
  %866 = vmatprep.mubr.bf16.mxu0 0
  %867 = vmatmul.mubr.bf16.gmra.mxu0 %v808
  %v868 = vpop.f32.mrf.mxu0
  %v869 = vadd.f32 0.0, %v868
  %v870 = vpop.f32.mrf.mxu0
  %v871 = vpop.f32.mrf.mxu0
  %v872 = vadd.f32 0.0, %v871
  %v873 = vpop.f32.mrf.mxu0
  %874 = vdwg.mxu0
  %v875 = vadd.f32 %v642, %v845
  %v876 = vadd.f32 %v643, %v848
  %v877 = vadd.f32 %v644, %v853
  %v878 = vadd.f32 %v645, %v856
  %v879 = vadd.f32 %v646, %v861
  %v880 = vadd.f32 %v647, %v864
  %v881 = vadd.f32 %v648, %v869
  %v882 = vadd.f32 %v649, %v872
  %v883 = vld [vmem:[%s528] sm:$0xe]
  %v884 = vld [vmem:[%s528 + $0x8] sm:$0xe]
  %v885 = vld [vmem:[%s528 + $0x10] sm:$0xe]
  %v886 = vld [vmem:[%s528 + $0x18] sm:$0xe]
  %v887 = vld [vmem:[%s528 + $0x20] sm:$0xe]
  %v888 = vld [vmem:[%s528 + $0x28] sm:$0xe]
  %v889 = vld [vmem:[%s528 + $0x30] sm:$0xe]
  %v890 = vld [vmem:[%s528 + $0x38] sm:$0xe]
  %v907 = vrot.slane %v883, 5
  %v908 = vrot.slane %v907, 4
  %v909 = vrot.slane %v651, 5
  %v910 = vsel %vm387, %v908, %v909
  %v911 = vrot.slane %v884, 5
  %v912 = vrot.slane %v911, 4
  %v913 = vrot.slane %v653, 5
  %v914 = vsel %vm387, %v912, %v913
  %v915 = vrot.slane %v885, 5
  %v916 = vrot.slane %v915, 4
  %v917 = vrot.slane %v655, 5
  %v918 = vsel %vm387, %v916, %v917
  %v919 = vrot.slane %v886, 5
  %v920 = vrot.slane %v919, 4
  %v921 = vrot.slane %v657, 5
  %v922 = vsel %vm387, %v920, %v921
  %v923 = vrot.slane %v887, 5
  %v924 = vrot.slane %v923, 4
  %v925 = vrot.slane %v659, 5
  %v926 = vsel %vm387, %v924, %v925
  %v927 = vrot.slane %v888, 5
  %v928 = vrot.slane %v927, 4
  %v929 = vrot.slane %v661, 5
  %v930 = vsel %vm387, %v928, %v929
  %v931 = vrot.slane %v889, 5
  %v932 = vrot.slane %v931, 4
  %v933 = vrot.slane %v663, 5
  %v934 = vsel %vm387, %v932, %v933
  %v935 = vrot.slane %v890, 5
  %v936 = vrot.slane %v935, 4
  %v937 = vrot.slane %v665, 5
  %v938 = vsel %vm387, %v936, %v937
  %v939 = vld [vmem:[%s1 + $0x28] sm:$0xf]
  %v940 = vld [vmem:[%s1 + $0x2c] sm:$0xf]
  %v941 = vunpack.c.l.b16 %v910
  %v942 = vunpack.c.l.b16 %v914
  %v943 = vunpack.c.l.b16 %v918
  %v944 = vunpack.c.l.b16 %v922
  %v945 = vunpack.c.l.b16 %v926
  %v946 = vunpack.c.l.b16 %v930
  %v947 = vunpack.c.l.b16 %v934
  %v948 = vunpack.c.l.b16 %v938
  %v949 = vpack.c.b16 %v942, %v941
  %v950 = vpack.c.b16 %v944, %v943
  %v951 = vpack.c.b16 %v946, %v945
  %v952 = vpack.c.b16 %v948, %v947
  %v955 = vunpack.c.l.b16 %v939
  %v956 = vunpack.c.l.b16 %v940
  %v957 = vpack.c.b16 %v956, %v955
  %v960 = vsel %vm180, %v949, 0
  %v963 = vsel %vm180, %v950, 0
  %v966 = vsel %vm180, %v951, 0
  %v969 = vsel %vm180, %v952, 0
  %971 = vmatprep.subr.bf16.mxu0 0
  %972 = vmatpush1.bf16.msra.mxu0 0
  %973 = vmatprep.subr.bf16.mxu0 0
  %974 = vmatpush1.bf16.msra.mxu0 0
  %975 = vmatprep.subr.bf16.mxu0 0
  %976 = vmatpush1.bf16.msra.mxu0 0
  %977 = vmatprep.subr.bf16.mxu0 0
  %978 = vmatpush1.bf16.msra.mxu0 0
  %979 = vmatprep.subr.bf16.mxu0 0
  %980 = vmatpush1.bf16.msra.mxu0 0
  %981 = vmatprep.subr.bf16.mxu0 0
  %982 = vmatpush1.bf16.msra.mxu0 0
  %983 = vmatprep.subr.bf16.mxu0 0
  %984 = vmatpush1.bf16.msra.mxu0 0
  %985 = vmatprep.subr.bf16.mxu0 0
  %986 = vmatpush1.bf16.msra.mxu0 %v957
  %987 = vmatprep.subr.bf16.mxu0 0
  %988 = vmatpush2.bf16.msra.mxu0 0
  %989 = vmatprep.subr.bf16.mxu0 0
  %990 = vmatpush2.bf16.msra.mxu0 0
  %991 = vmatprep.subr.bf16.mxu0 0
  %992 = vmatpush2.bf16.msra.mxu0 0
  %993 = vmatprep.subr.bf16.mxu0 0
  %994 = vmatpush2.bf16.msra.mxu0 0
  %995 = vmatprep.subr.bf16.mxu0 0
  %996 = vmatpush2.bf16.msra.mxu0 0
  %997 = vmatprep.subr.bf16.mxu0 0
  %998 = vmatpush2.bf16.msra.mxu0 0
  %999 = vmatprep.subr.bf16.mxu0 0
  %1000 = vmatpush2.bf16.msra.mxu0 0
  %1001 = vmatprep.subr.bf16.mxu0 0
  %1002 = vmatpush2.bf16.msra.mxu0 0
  %1003 = vmatprep.mubr.bf16.mxu0 0
  %1004 = vmatmul.mubr.bf16.gmra.mxu0 %v960
  %v1005 = vpop.f32.mrf.mxu0
  %v1006 = vadd.f32 0.0, %v1005
  %v1007 = vpop.f32.mrf.mxu0
  %v1008 = vpop.f32.mrf.mxu0
  %v1009 = vadd.f32 0.0, %v1008
  %v1010 = vpop.f32.mrf.mxu0
  %1011 = vmatprep.mubr.bf16.mxu0 0
  %1012 = vmatmul.mubr.bf16.gmra.mxu0 %v963
  %v1013 = vpop.f32.mrf.mxu0
  %v1014 = vadd.f32 0.0, %v1013
  %v1015 = vpop.f32.mrf.mxu0
  %v1016 = vpop.f32.mrf.mxu0
  %v1017 = vadd.f32 0.0, %v1016
  %v1018 = vpop.f32.mrf.mxu0
  %1019 = vmatprep.mubr.bf16.mxu0 0
  %1020 = vmatmul.mubr.bf16.gmra.mxu0 %v966
  %v1021 = vpop.f32.mrf.mxu0
  %v1022 = vadd.f32 0.0, %v1021
  %v1023 = vpop.f32.mrf.mxu0
  %v1024 = vpop.f32.mrf.mxu0
  %v1025 = vadd.f32 0.0, %v1024
  %v1026 = vpop.f32.mrf.mxu0
  %1027 = vmatprep.mubr.bf16.mxu0 0
  %1028 = vmatmul.mubr.bf16.gmra.mxu0 %v969
  %v1029 = vpop.f32.mrf.mxu0
  %v1030 = vadd.f32 0.0, %v1029
  %v1031 = vpop.f32.mrf.mxu0
  %v1032 = vpop.f32.mrf.mxu0
  %v1033 = vadd.f32 0.0, %v1032
  %v1034 = vpop.f32.mrf.mxu0
  %1035 = vdwg.mxu0
  %v1036 = vadd.f32 %v875, %v1006
  %v1037 = vadd.f32 %v876, %v1009
  %v1038 = vadd.f32 %v877, %v1014
  %v1039 = vadd.f32 %v878, %v1017
  %v1040 = vadd.f32 %v879, %v1022
  %v1041 = vadd.f32 %v880, %v1025
  %v1042 = vadd.f32 %v881, %v1030
  %v1043 = vadd.f32 %v882, %v1033
  %s1044 = sadd.s32 %s23, 2
  %s1045 = smul.u32 %s1044, 2
  %s1046 = smul.addr %s1045, 4
  %s1047 = scalar_lea.vmem %s0, %s1046
  %v1048 = vld [vmem:[%s1047] sm:$0xf]
  %v1049 = vld [vmem:[%s1047 + $0x8] sm:$0xf]
  %v1050 = vld [vmem:[%s1047 + $0x10] sm:$0xf]
  %v1051 = vld [vmem:[%s1047 + $0x18] sm:$0xf]
  %v1052 = vld [vmem:[%s1047 + $0x20] sm:$0xf]
  %v1053 = vld [vmem:[%s1047 + $0x28] sm:$0xf]
  %v1054 = vld [vmem:[%s1047 + $0x30] sm:$0xf]
  %v1055 = vld [vmem:[%s1047 + $0x38] sm:$0xf]
  %v1056 = vld [vmem:[%s1 + $0x30] sm:$0xf]
  %v1057 = vld [vmem:[%s1 + $0x34] sm:$0xf]
  %v1066 = vunpack.c.l.b16 %v1048
  %v1067 = vunpack.c.l.b16 %v1049
  %v1068 = vunpack.c.l.b16 %v1050
  %v1069 = vunpack.c.l.b16 %v1051
  %v1070 = vunpack.c.l.b16 %v1052
  %v1071 = vunpack.c.l.b16 %v1053
  %v1072 = vunpack.c.l.b16 %v1054
  %v1073 = vunpack.c.l.b16 %v1055
  %v1074 = vpack.c.b16 %v1067, %v1066
  %v1075 = vpack.c.b16 %v1069, %v1068
  %v1076 = vpack.c.b16 %v1071, %v1070
  %v1077 = vpack.c.b16 %v1073, %v1072
  %v1080 = vunpack.c.l.b16 %v1056
  %v1081 = vunpack.c.l.b16 %v1057
  %v1082 = vpack.c.b16 %v1081, %v1080
  %v1085 = vsel %vm180, %v1074, 0
  %v1088 = vsel %vm180, %v1075, 0
  %v1091 = vsel %vm180, %v1076, 0
  %v1094 = vsel %vm180, %v1077, 0
  %1096 = vmatprep.subr.bf16.mxu0 0
  %1097 = vmatpush1.bf16.msra.mxu0 0
  %1098 = vmatprep.subr.bf16.mxu0 0
  %1099 = vmatpush1.bf16.msra.mxu0 0
  %1100 = vmatprep.subr.bf16.mxu0 0
  %1101 = vmatpush1.bf16.msra.mxu0 0
  %1102 = vmatprep.subr.bf16.mxu0 0
  %1103 = vmatpush1.bf16.msra.mxu0 0
  %1104 = vmatprep.subr.bf16.mxu0 0
  %1105 = vmatpush1.bf16.msra.mxu0 0
  %1106 = vmatprep.subr.bf16.mxu0 0
  %1107 = vmatpush1.bf16.msra.mxu0 0
  %1108 = vmatprep.subr.bf16.mxu0 0
  %1109 = vmatpush1.bf16.msra.mxu0 0
  %1110 = vmatprep.subr.bf16.mxu0 0
  %1111 = vmatpush1.bf16.msra.mxu0 %v1082
  %1112 = vmatprep.subr.bf16.mxu0 0
  %1113 = vmatpush2.bf16.msra.mxu0 0
  %1114 = vmatprep.subr.bf16.mxu0 0
  %1115 = vmatpush2.bf16.msra.mxu0 0
  %1116 = vmatprep.subr.bf16.mxu0 0
  %1117 = vmatpush2.bf16.msra.mxu0 0
  %1118 = vmatprep.subr.bf16.mxu0 0
  %1119 = vmatpush2.bf16.msra.mxu0 0
  %1120 = vmatprep.subr.bf16.mxu0 0
  %1121 = vmatpush2.bf16.msra.mxu0 0
  %1122 = vmatprep.subr.bf16.mxu0 0
  %1123 = vmatpush2.bf16.msra.mxu0 0
  %1124 = vmatprep.subr.bf16.mxu0 0
  %1125 = vmatpush2.bf16.msra.mxu0 0
  %1126 = vmatprep.subr.bf16.mxu0 0
  %1127 = vmatpush2.bf16.msra.mxu0 0
  %1128 = vmatprep.mubr.bf16.mxu0 0
  %1129 = vmatmul.mubr.bf16.gmra.mxu0 %v1085
  %v1130 = vpop.f32.mrf.mxu0
  %v1131 = vadd.f32 0.0, %v1130
  %v1132 = vpop.f32.mrf.mxu0
  %v1133 = vpop.f32.mrf.mxu0
  %v1134 = vadd.f32 0.0, %v1133
  %v1135 = vpop.f32.mrf.mxu0
  %1136 = vmatprep.mubr.bf16.mxu0 0
  %1137 = vmatmul.mubr.bf16.gmra.mxu0 %v1088
  %v1138 = vpop.f32.mrf.mxu0
  %v1139 = vadd.f32 0.0, %v1138
  %v1140 = vpop.f32.mrf.mxu0
  %v1141 = vpop.f32.mrf.mxu0
  %v1142 = vadd.f32 0.0, %v1141
  %v1143 = vpop.f32.mrf.mxu0
  %1144 = vmatprep.mubr.bf16.mxu0 0
  %1145 = vmatmul.mubr.bf16.gmra.mxu0 %v1091
  %v1146 = vpop.f32.mrf.mxu0
  %v1147 = vadd.f32 0.0, %v1146
  %v1148 = vpop.f32.mrf.mxu0
  %v1149 = vpop.f32.mrf.mxu0
  %v1150 = vadd.f32 0.0, %v1149
  %v1151 = vpop.f32.mrf.mxu0
  %1152 = vmatprep.mubr.bf16.mxu0 0
  %1153 = vmatmul.mubr.bf16.gmra.mxu0 %v1094
  %v1154 = vpop.f32.mrf.mxu0
  %v1155 = vadd.f32 0.0, %v1154
  %v1156 = vpop.f32.mrf.mxu0
  %v1157 = vpop.f32.mrf.mxu0
  %v1158 = vadd.f32 0.0, %v1157
  %v1159 = vpop.f32.mrf.mxu0
  %1160 = vdwg.mxu0
  %v1161 = vadd.f32 %v1036, %v1131
  %v1162 = vadd.f32 %v1037, %v1134
  %v1163 = vadd.f32 %v1038, %v1139
  %v1164 = vadd.f32 %v1039, %v1142
  %v1165 = vadd.f32 %v1040, %v1147
  %v1166 = vadd.f32 %v1041, %v1150
  %v1167 = vadd.f32 %v1042, %v1155
  %v1168 = vadd.f32 %v1043, %v1158
  %v1169 = vld [vmem:[%s1047] sm:$0xf]
  %v1170 = vld [vmem:[%s1047 + $0x4] sm:$0x1]
  %v1171 = vld [vmem:[%s1047 + $0x8] sm:$0xf]
  %v1172 = vld [vmem:[%s1047 + $0xc] sm:$0x1]
  %v1173 = vld [vmem:[%s1047 + $0x10] sm:$0xf]
  %v1174 = vld [vmem:[%s1047 + $0x14] sm:$0x1]
  %v1175 = vld [vmem:[%s1047 + $0x18] sm:$0xf]
  %v1176 = vld [vmem:[%s1047 + $0x1c] sm:$0x1]
  %v1177 = vld [vmem:[%s1047 + $0x20] sm:$0xf]
  %v1178 = vld [vmem:[%s1047 + $0x24] sm:$0x1]
  %v1179 = vld [vmem:[%s1047 + $0x28] sm:$0xf]
  %v1180 = vld [vmem:[%s1047 + $0x2c] sm:$0x1]
  %v1181 = vld [vmem:[%s1047 + $0x30] sm:$0xf]
  %v1182 = vld [vmem:[%s1047 + $0x34] sm:$0x1]
  %v1183 = vld [vmem:[%s1047 + $0x38] sm:$0xf]
  %v1184 = vld [vmem:[%s1047 + $0x3c] sm:$0x1]
  %v1186 = vshrl.u32 %v1169, 16
  %v1188 = vrot.slane %v1186, 4
  %v1189 = vshll.u32 %v1169, 16
  %v1191 = vrot.slane %v1189, 5
  %v1192 = vor.u32 %v1188, %v1191
  %v1193 = vrot.slane %v1192, 4
  %v1195 = vshll.u32 %v1170, 16
  %v1197 = vrot.slane %v1195, 5
  %v1198 = vsel %vm47, %v1193, %v1197
  %v1200 = vshrl.u32 %v1171, 16
  %v1202 = vrot.slane %v1200, 4
  %v1203 = vshll.u32 %v1171, 16
  %v1205 = vrot.slane %v1203, 5
  %v1206 = vor.u32 %v1202, %v1205
  %v1207 = vrot.slane %v1206, 4
  %v1209 = vshll.u32 %v1172, 16
  %v1211 = vrot.slane %v1209, 5
  %v1212 = vsel %vm47, %v1207, %v1211
  %v1214 = vshrl.u32 %v1173, 16
  %v1216 = vrot.slane %v1214, 4
  %v1217 = vshll.u32 %v1173, 16
  %v1219 = vrot.slane %v1217, 5
  %v1220 = vor.u32 %v1216, %v1219
  %v1221 = vrot.slane %v1220, 4
  %v1223 = vshll.u32 %v1174, 16
  %v1225 = vrot.slane %v1223, 5
  %v1226 = vsel %vm47, %v1221, %v1225
  %v1228 = vshrl.u32 %v1175, 16
  %v1230 = vrot.slane %v1228, 4
  %v1231 = vshll.u32 %v1175, 16
  %v1233 = vrot.slane %v1231, 5
  %v1234 = vor.u32 %v1230, %v1233
  %v1235 = vrot.slane %v1234, 4
  %v1237 = vshll.u32 %v1176, 16
  %v1239 = vrot.slane %v1237, 5
  %v1240 = vsel %vm47, %v1235, %v1239
  %v1242 = vshrl.u32 %v1177, 16
  %v1244 = vrot.slane %v1242, 4
  %v1245 = vshll.u32 %v1177, 16
  %v1247 = vrot.slane %v1245, 5
  %v1248 = vor.u32 %v1244, %v1247
  %v1249 = vrot.slane %v1248, 4
  %v1251 = vshll.u32 %v1178, 16
  %v1253 = vrot.slane %v1251, 5
  %v1254 = vsel %vm47, %v1249, %v1253
  %v1256 = vshrl.u32 %v1179, 16
  %v1258 = vrot.slane %v1256, 4
  %v1259 = vshll.u32 %v1179, 16
  %v1261 = vrot.slane %v1259, 5
  %v1262 = vor.u32 %v1258, %v1261
  %v1263 = vrot.slane %v1262, 4
  %v1265 = vshll.u32 %v1180, 16
  %v1267 = vrot.slane %v1265, 5
  %v1268 = vsel %vm47, %v1263, %v1267
  %v1270 = vshrl.u32 %v1181, 16
  %v1272 = vrot.slane %v1270, 4
  %v1273 = vshll.u32 %v1181, 16
  %v1275 = vrot.slane %v1273, 5
  %v1276 = vor.u32 %v1272, %v1275
  %v1277 = vrot.slane %v1276, 4
  %v1279 = vshll.u32 %v1182, 16
  %v1281 = vrot.slane %v1279, 5
  %v1282 = vsel %vm47, %v1277, %v1281
  %v1284 = vshrl.u32 %v1183, 16
  %v1286 = vrot.slane %v1284, 4
  %v1287 = vshll.u32 %v1183, 16
  %v1289 = vrot.slane %v1287, 5
  %v1290 = vor.u32 %v1286, %v1289
  %v1291 = vrot.slane %v1290, 4
  %v1293 = vshll.u32 %v1184, 16
  %v1295 = vrot.slane %v1293, 5
  %v1296 = vsel %vm47, %v1291, %v1295
  %v1297 = vld [vmem:[%s1 + $0x38] sm:$0xf]
  %v1298 = vld [vmem:[%s1 + $0x3c] sm:$0xf]
  %v1299 = vunpack.c.l.b16 %v1198
  %v1300 = vunpack.c.l.b16 %v1212
  %v1301 = vunpack.c.l.b16 %v1226
  %v1302 = vunpack.c.l.b16 %v1240
  %v1303 = vunpack.c.l.b16 %v1254
  %v1304 = vunpack.c.l.b16 %v1268
  %v1305 = vunpack.c.l.b16 %v1282
  %v1306 = vunpack.c.l.b16 %v1296
  %v1307 = vpack.c.b16 %v1300, %v1299
  %v1308 = vpack.c.b16 %v1302, %v1301
  %v1309 = vpack.c.b16 %v1304, %v1303
  %v1310 = vpack.c.b16 %v1306, %v1305
  %v1313 = vunpack.c.l.b16 %v1297
  %v1314 = vunpack.c.l.b16 %v1298
  %v1315 = vpack.c.b16 %v1314, %v1313
  %v1318 = vsel %vm180, %v1307, 0
  %v1321 = vsel %vm180, %v1308, 0
  %v1324 = vsel %vm180, %v1309, 0
  %v1327 = vsel %vm180, %v1310, 0
  %1329 = vmatprep.subr.bf16.mxu0 0
  %1330 = vmatpush1.bf16.msra.mxu0 0
  %1331 = vmatprep.subr.bf16.mxu0 0
  %1332 = vmatpush1.bf16.msra.mxu0 0
  %1333 = vmatprep.subr.bf16.mxu0 0
  %1334 = vmatpush1.bf16.msra.mxu0 0
  %1335 = vmatprep.subr.bf16.mxu0 0
  %1336 = vmatpush1.bf16.msra.mxu0 0
  %1337 = vmatprep.subr.bf16.mxu0 0
  %1338 = vmatpush1.bf16.msra.mxu0 0
  %1339 = vmatprep.subr.bf16.mxu0 0
  %1340 = vmatpush1.bf16.msra.mxu0 0
  %1341 = vmatprep.subr.bf16.mxu0 0
  %1342 = vmatpush1.bf16.msra.mxu0 0
  %1343 = vmatprep.subr.bf16.mxu0 0
  %1344 = vmatpush1.bf16.msra.mxu0 %v1315
  %1345 = vmatprep.subr.bf16.mxu0 0
  %1346 = vmatpush2.bf16.msra.mxu0 0
  %1347 = vmatprep.subr.bf16.mxu0 0
  %1348 = vmatpush2.bf16.msra.mxu0 0
  %1349 = vmatprep.subr.bf16.mxu0 0
  %1350 = vmatpush2.bf16.msra.mxu0 0
  %1351 = vmatprep.subr.bf16.mxu0 0
  %1352 = vmatpush2.bf16.msra.mxu0 0
  %1353 = vmatprep.subr.bf16.mxu0 0
  %1354 = vmatpush2.bf16.msra.mxu0 0
  %1355 = vmatprep.subr.bf16.mxu0 0
  %1356 = vmatpush2.bf16.msra.mxu0 0
  %1357 = vmatprep.subr.bf16.mxu0 0
  %1358 = vmatpush2.bf16.msra.mxu0 0
  %1359 = vmatprep.subr.bf16.mxu0 0
  %1360 = vmatpush2.bf16.msra.mxu0 0
  %1361 = vmatprep.mubr.bf16.mxu0 0
  %1362 = vmatmul.mubr.bf16.gmra.mxu0 %v1318
  %v1363 = vpop.f32.mrf.mxu0
  %v1364 = vadd.f32 0.0, %v1363
  %v1365 = vpop.f32.mrf.mxu0
  %v1366 = vpop.f32.mrf.mxu0
  %v1367 = vadd.f32 0.0, %v1366
  %v1368 = vpop.f32.mrf.mxu0
  %1369 = vmatprep.mubr.bf16.mxu0 0
  %1370 = vmatmul.mubr.bf16.gmra.mxu0 %v1321
  %v1371 = vpop.f32.mrf.mxu0
  %v1372 = vadd.f32 0.0, %v1371
  %v1373 = vpop.f32.mrf.mxu0
  %v1374 = vpop.f32.mrf.mxu0
  %v1375 = vadd.f32 0.0, %v1374
  %v1376 = vpop.f32.mrf.mxu0
  %1377 = vmatprep.mubr.bf16.mxu0 0
  %1378 = vmatmul.mubr.bf16.gmra.mxu0 %v1324
  %v1379 = vpop.f32.mrf.mxu0
  %v1380 = vadd.f32 0.0, %v1379
  %v1381 = vpop.f32.mrf.mxu0
  %v1382 = vpop.f32.mrf.mxu0
  %v1383 = vadd.f32 0.0, %v1382
  %v1384 = vpop.f32.mrf.mxu0
  %1385 = vmatprep.mubr.bf16.mxu0 0
  %1386 = vmatmul.mubr.bf16.gmra.mxu0 %v1327
  %v1387 = vpop.f32.mrf.mxu0
  %v1388 = vadd.f32 0.0, %v1387
  %v1389 = vpop.f32.mrf.mxu0
  %v1390 = vpop.f32.mrf.mxu0
  %v1391 = vadd.f32 0.0, %v1390
  %v1392 = vpop.f32.mrf.mxu0
  %1393 = vdwg.mxu0
  %v1394 = vadd.f32 %v1161, %v1364
  %v1395 = vadd.f32 %v1162, %v1367
  %v1396 = vadd.f32 %v1163, %v1372
  %v1397 = vadd.f32 %v1164, %v1375
  %v1398 = vadd.f32 %v1165, %v1380
  %v1399 = vadd.f32 %v1166, %v1383
  %v1400 = vadd.f32 %v1167, %v1388
  %v1401 = vadd.f32 %v1168, %v1391
  %v1402 = vld [vmem:[%s1047] sm:$0xe]
  %v1403 = vld [vmem:[%s1047 + $0x8] sm:$0xe]
  %v1404 = vld [vmem:[%s1047 + $0x10] sm:$0xe]
  %v1405 = vld [vmem:[%s1047 + $0x18] sm:$0xe]
  %v1406 = vld [vmem:[%s1047 + $0x20] sm:$0xe]
  %v1407 = vld [vmem:[%s1047 + $0x28] sm:$0xe]
  %v1408 = vld [vmem:[%s1047 + $0x30] sm:$0xe]
  %v1409 = vld [vmem:[%s1047 + $0x38] sm:$0xe]
  %v1426 = vrot.slane %v1402, 5
  %v1427 = vrot.slane %v1426, 4
  %v1428 = vrot.slane %v1170, 5
  %v1429 = vsel %vm387, %v1427, %v1428
  %v1430 = vrot.slane %v1403, 5
  %v1431 = vrot.slane %v1430, 4
  %v1432 = vrot.slane %v1172, 5
  %v1433 = vsel %vm387, %v1431, %v1432
  %v1434 = vrot.slane %v1404, 5
  %v1435 = vrot.slane %v1434, 4
  %v1436 = vrot.slane %v1174, 5
  %v1437 = vsel %vm387, %v1435, %v1436
  %v1438 = vrot.slane %v1405, 5
  %v1439 = vrot.slane %v1438, 4
  %v1440 = vrot.slane %v1176, 5
  %v1441 = vsel %vm387, %v1439, %v1440
  %v1442 = vrot.slane %v1406, 5
  %v1443 = vrot.slane %v1442, 4
  %v1444 = vrot.slane %v1178, 5
  %v1445 = vsel %vm387, %v1443, %v1444
  %v1446 = vrot.slane %v1407, 5
  %v1447 = vrot.slane %v1446, 4
  %v1448 = vrot.slane %v1180, 5
  %v1449 = vsel %vm387, %v1447, %v1448
  %v1450 = vrot.slane %v1408, 5
  %v1451 = vrot.slane %v1450, 4
  %v1452 = vrot.slane %v1182, 5
  %v1453 = vsel %vm387, %v1451, %v1452
  %v1454 = vrot.slane %v1409, 5
  %v1455 = vrot.slane %v1454, 4
  %v1456 = vrot.slane %v1184, 5
  %v1457 = vsel %vm387, %v1455, %v1456
  %v1458 = vld [vmem:[%s1 + $0x40] sm:$0xf]
  %v1459 = vld [vmem:[%s1 + $0x44] sm:$0xf]
  %v1460 = vunpack.c.l.b16 %v1429
  %v1461 = vunpack.c.l.b16 %v1433
  %v1462 = vunpack.c.l.b16 %v1437
  %v1463 = vunpack.c.l.b16 %v1441
  %v1464 = vunpack.c.l.b16 %v1445
  %v1465 = vunpack.c.l.b16 %v1449
  %v1466 = vunpack.c.l.b16 %v1453
  %v1467 = vunpack.c.l.b16 %v1457
  %v1468 = vpack.c.b16 %v1461, %v1460
  %v1469 = vpack.c.b16 %v1463, %v1462
  %v1470 = vpack.c.b16 %v1465, %v1464
  %v1471 = vpack.c.b16 %v1467, %v1466
  %v1474 = vunpack.c.l.b16 %v1458
  %v1475 = vunpack.c.l.b16 %v1459
  %v1476 = vpack.c.b16 %v1475, %v1474
  %v1479 = vsel %vm180, %v1468, 0
  %v1482 = vsel %vm180, %v1469, 0
  %v1485 = vsel %vm180, %v1470, 0
  %v1488 = vsel %vm180, %v1471, 0
  %1490 = vmatprep.subr.bf16.mxu0 0
  %1491 = vmatpush1.bf16.msra.mxu0 0
  %1492 = vmatprep.subr.bf16.mxu0 0
  %1493 = vmatpush1.bf16.msra.mxu0 0
  %1494 = vmatprep.subr.bf16.mxu0 0
  %1495 = vmatpush1.bf16.msra.mxu0 0
  %1496 = vmatprep.subr.bf16.mxu0 0
  %1497 = vmatpush1.bf16.msra.mxu0 0
  %1498 = vmatprep.subr.bf16.mxu0 0
  %1499 = vmatpush1.bf16.msra.mxu0 0
  %1500 = vmatprep.subr.bf16.mxu0 0
  %1501 = vmatpush1.bf16.msra.mxu0 0
  %1502 = vmatprep.subr.bf16.mxu0 0
  %1503 = vmatpush1.bf16.msra.mxu0 0
  %1504 = vmatprep.subr.bf16.mxu0 0
  %1505 = vmatpush1.bf16.msra.mxu0 %v1476
  %1506 = vmatprep.subr.bf16.mxu0 0
  %1507 = vmatpush2.bf16.msra.mxu0 0
  %1508 = vmatprep.subr.bf16.mxu0 0
  %1509 = vmatpush2.bf16.msra.mxu0 0
  %1510 = vmatprep.subr.bf16.mxu0 0
  %1511 = vmatpush2.bf16.msra.mxu0 0
  %1512 = vmatprep.subr.bf16.mxu0 0
  %1513 = vmatpush2.bf16.msra.mxu0 0
  %1514 = vmatprep.subr.bf16.mxu0 0
  %1515 = vmatpush2.bf16.msra.mxu0 0
  %1516 = vmatprep.subr.bf16.mxu0 0
  %1517 = vmatpush2.bf16.msra.mxu0 0
  %1518 = vmatprep.subr.bf16.mxu0 0
  %1519 = vmatpush2.bf16.msra.mxu0 0
  %1520 = vmatprep.subr.bf16.mxu0 0
  %1521 = vmatpush2.bf16.msra.mxu0 0
  %1522 = vmatprep.mubr.bf16.mxu0 0
  %1523 = vmatmul.mubr.bf16.gmra.mxu0 %v1479
  %v1524 = vpop.f32.mrf.mxu0
  %v1525 = vadd.f32 0.0, %v1524
  %v1526 = vpop.f32.mrf.mxu0
  %v1527 = vpop.f32.mrf.mxu0
  %v1528 = vadd.f32 0.0, %v1527
  %v1529 = vpop.f32.mrf.mxu0
  %1530 = vmatprep.mubr.bf16.mxu0 0
  %1531 = vmatmul.mubr.bf16.gmra.mxu0 %v1482
  %v1532 = vpop.f32.mrf.mxu0
  %v1533 = vadd.f32 0.0, %v1532
  %v1534 = vpop.f32.mrf.mxu0
  %v1535 = vpop.f32.mrf.mxu0
  %v1536 = vadd.f32 0.0, %v1535
  %v1537 = vpop.f32.mrf.mxu0
  %1538 = vmatprep.mubr.bf16.mxu0 0
  %1539 = vmatmul.mubr.bf16.gmra.mxu0 %v1485
  %v1540 = vpop.f32.mrf.mxu0
  %v1541 = vadd.f32 0.0, %v1540
  %v1542 = vpop.f32.mrf.mxu0
  %v1543 = vpop.f32.mrf.mxu0
  %v1544 = vadd.f32 0.0, %v1543
  %v1545 = vpop.f32.mrf.mxu0
  %1546 = vmatprep.mubr.bf16.mxu0 0
  %1547 = vmatmul.mubr.bf16.gmra.mxu0 %v1488
  %v1548 = vpop.f32.mrf.mxu0
  %v1549 = vadd.f32 0.0, %v1548
  %v1550 = vpop.f32.mrf.mxu0
  %v1551 = vpop.f32.mrf.mxu0
  %v1552 = vadd.f32 0.0, %v1551
  %v1553 = vpop.f32.mrf.mxu0
  %1554 = vdwg.mxu0
  %v1555 = vadd.f32 %v1394, %v1525
  %v1556 = vadd.f32 %v1395, %v1528
  %v1557 = vadd.f32 %v1396, %v1533
  %v1558 = vadd.f32 %v1397, %v1536
  %v1559 = vadd.f32 %v1398, %v1541
  %v1560 = vadd.f32 %v1399, %v1544
  %v1561 = vadd.f32 %v1400, %v1549
  %v1562 = vadd.f32 %v1401, %v1552
  %v1563 = vld [vmem:[%s2] sm:$0x1]
  %v1565 = vlaneseq
  %v1566 = vshrl.u32 %v1565, 7
  %v1567 = vsub.s32 0, %v1566
  %v1568 = vrot.slane %v1563, %v1567
  %v1570 = vadd.f32 %v1555, %v1568
  %v1571 = vadd.f32 %v1556, %v1568
  %v1572 = vadd.f32 %v1557, %v1568
  %v1573 = vadd.f32 %v1558, %v1568
  %v1574 = vadd.f32 %v1559, %v1568
  %v1575 = vadd.f32 %v1560, %v1568
  %v1576 = vadd.f32 %v1561, %v1568
  %v1577 = vadd.f32 %v1562, %v1568
  %v1578 = vmax.f32 %v1570, 0.0
  %v1579 = vmax.f32 %v1571, 0.0
  %v1580 = vmax.f32 %v1572, 0.0
  %v1581 = vmax.f32 %v1573, 0.0
  %v1582 = vmax.f32 %v1574, 0.0
  %v1583 = vmax.f32 %v1575, 0.0
  %v1584 = vmax.f32 %v1576, 0.0
  %v1585 = vmax.f32 %v1577, 0.0
  %v1586 = vld [vmem:[%s3] sm:$0x1]
  %v1588 = vlaneseq
  %v1589 = vshrl.u32 %v1588, 7
  %v1590 = vsub.s32 0, %v1589
  %v1591 = vrot.slane %v1586, %v1590
  %v1593 = vmul.f32 %v1578, %v1591
  %v1594 = vmul.f32 %v1579, %v1591
  %v1595 = vmul.f32 %v1580, %v1591
  %v1596 = vmul.f32 %v1581, %v1591
  %v1597 = vmul.f32 %v1582, %v1591
  %v1598 = vmul.f32 %v1583, %v1591
  %v1599 = vmul.f32 %v1584, %v1591
  %v1600 = vmul.f32 %v1585, %v1591
  %v1601 = vsel %vm180, %v1593, 0.0
  %1602 = vadd.xlane.f32.xlu0 %v1601
  %v1603 = vpop.xlane.xlu0 %1602
  %v1604 = vsel %vm180, %v1594, 0.0
  %1605 = vadd.xlane.f32.xlu0 %v1604
  %v1606 = vpop.xlane.xlu0 %1605
  %v1607 = vsel %vm180, %v1595, 0.0
  %1608 = vadd.xlane.f32.xlu0 %v1607
  %v1609 = vpop.xlane.xlu0 %1608
  %v1610 = vsel %vm180, %v1596, 0.0
  %1611 = vadd.xlane.f32.xlu0 %v1610
  %v1612 = vpop.xlane.xlu0 %1611
  %v1613 = vsel %vm180, %v1597, 0.0
  %1614 = vadd.xlane.f32.xlu0 %v1613
  %v1615 = vpop.xlane.xlu0 %1614
  %v1616 = vsel %vm180, %v1598, 0.0
  %1617 = vadd.xlane.f32.xlu0 %v1616
  %v1618 = vpop.xlane.xlu0 %1617
  %v1619 = vsel %vm180, %v1599, 0.0
  %1620 = vadd.xlane.f32.xlu0 %v1619
  %v1621 = vpop.xlane.xlu0 %1620
  %v1622 = vsel %vm180, %v1600, 0.0
  %1623 = vadd.xlane.f32.xlu0 %v1622
  %v1624 = vpop.xlane.xlu0 %1623
  %v1625 = vld [vmem:[#allocation2] sm:$0x1]
  %v1627 = vlaneseq
  %v1628 = vshrl.u32 %v1627, 7
  %v1629 = vsub.s32 0, %v1628
  %v1630 = vrot.slane %v1625, %v1629
  %1631 = vset.pattern.permute.xlu0 0
  %1632 = vperm.xlu0 %1631, %v1630
  %v1633 = vpop.permute.xlu0 %1632
  %v1635 = vadd.f32 %v1603, %v1633
  %v1636 = vadd.f32 %v1606, %v1633
  %v1637 = vadd.f32 %v1609, %v1633
  %v1638 = vadd.f32 %v1612, %v1633
  %v1639 = vadd.f32 %v1615, %v1633
  %v1640 = vadd.f32 %v1618, %v1633
  %v1641 = vadd.f32 %v1621, %v1633
  %v1642 = vadd.f32 %v1624, %v1633
  %v1651 = vlaneseq
  %v1652 = vand.u32 %v1651, 127
  %v1653 = vlaneseq
  %v1654 = vshrl.u32 %v1653, 7
  %v1655 = vsub.s32 %v1652, %v1654
  %v1656 = vrot.slane %v1635, %v1655
  %v1657 = vlaneseq
  %v1658 = vshrl.u32 %v1657, 7
  %v1659 = vsub.s32 %v1652, %v1658
  %v1660 = vrot.slane %v1636, %v1659
  %v1661 = vlaneseq
  %v1662 = vshrl.u32 %v1661, 7
  %v1663 = vsub.s32 %v1652, %v1662
  %v1664 = vrot.slane %v1637, %v1663
  %v1665 = vlaneseq
  %v1666 = vshrl.u32 %v1665, 7
  %v1667 = vsub.s32 %v1652, %v1666
  %v1668 = vrot.slane %v1638, %v1667
  %v1669 = vlaneseq
  %v1670 = vshrl.u32 %v1669, 7
  %v1671 = vsub.s32 %v1652, %v1670
  %v1672 = vrot.slane %v1639, %v1671
  %v1673 = vlaneseq
  %v1674 = vshrl.u32 %v1673, 7
  %v1675 = vsub.s32 %v1652, %v1674
  %v1676 = vrot.slane %v1640, %v1675
  %v1677 = vlaneseq
  %v1678 = vshrl.u32 %v1677, 7
  %v1679 = vsub.s32 %v1652, %v1678
  %v1680 = vrot.slane %v1641, %v1679
  %v1681 = vlaneseq
  %v1682 = vshrl.u32 %v1681, 7
  %v1683 = vsub.s32 %v1652, %v1682
  %v1684 = vrot.slane %v1642, %v1683
  %vm1685 = vcmask 1041409
  %v1686 = vsel %vm1685, %v1660, %v1656
  %vm1687 = vcmask 1042434
  %v1688 = vsel %vm1687, %v1664, %v1686
  %vm1689 = vcmask 1043459
  %v1690 = vsel %vm1689, %v1668, %v1688
  %vm1691 = vcmask 1044484
  %v1692 = vsel %vm1691, %v1672, %v1690
  %vm1693 = vcmask 1045509
  %v1694 = vsel %vm1693, %v1676, %v1692
  %vm1695 = vcmask 1046534
  %v1696 = vsel %vm1695, %v1680, %v1694
  %vm1697 = vcmask 1047559
  %v1698 = vsel %vm1697, %v1684, %v1696
  %vm1700 = vcmask 64512
  %1701 = vst.msk [vmem:[%s5] sm:$0xff] %vm1700, %v1698
  // Predicated region
  $region22: #{_forward_impl.4} parent=0 // pred_check
    _
  $region23: #{_forward_impl.4} parent=0 // pred_check_branch
    %1703 = sbr.rel (0) target = $region25
  $region24: #{_forward_impl.4} parent=0 // pred_region
    _
  $region25: #{_forward_impl.4} parent=0 // pred_fallthru
    _
  // Predicated region
  $region26: #{_forward_impl.4} parent=0 // pred_check
    _
  $region27: #{_forward_impl.4} parent=0 // pred_check_branch
    %1705 = sbr.rel (0) target = $region29
  $region28: #{_forward_impl.4} parent=0 // pred_region
    _
  $region29: #{_forward_impl.4} parent=0 // pred_fallthru
    _

</llo_original>
